<compile_context>
chip_gen: v7x
topology: tpu7x:2x2x1
jax: 0.10.0
libtpu: 0.0.40
codegen_flags: <defaults>
</compile_context>

<pallas_src>
import numpy as np
import jax
import jax.numpy as jnp
from jax import lax
from jax.experimental import pallas as pl
from jax.experimental.pallas import tpu as pltpu

HIDDEN = 100        # model hidden size (PyTorch LSTM(1, 100))
HIDDEN_PAD = 128    # lane-padded hidden size
K_IN = 8            # sublane-padded input-feature dim for the encoder input matmul
DEC_STEPS = 2       # x.repeat(1, 2, 1)


# ----------------------------- Pallas kernel --------------------------------
def _make_kernel(T, B, mxu_dtype):
    """Build the kernel for static seq-len T and sublane-padded batch B."""
    HP = HIDDEN_PAD

    def lstm_cell(gates, c):
        # PyTorch gate order i, f, g, o — each gate occupies one 128-lane group.
        i = jax.nn.sigmoid(gates[:, 0 * HP:1 * HP])
        f = jax.nn.sigmoid(gates[:, 1 * HP:2 * HP])
        g = jnp.tanh(gates[:, 2 * HP:3 * HP])
        o = jax.nn.sigmoid(gates[:, 3 * HP:4 * HP])
        c_new = f * c + i * g
        h_new = o * jnp.tanh(c_new)
        return h_new, c_new

    def kernel(x_ref, enc_wih_ref, enc_whh_ref, enc_b_ref,
               dec_wih_hbm, dec_whh_hbm, dec_b_ref,
               tail_w_ref, tail_b_ref, out_ref,
               inproj_scr, dec_wih_vmem, dec_whh_vmem, dma_sem):
        # ---- start decoder-weight HBM->VMEM DMAs; they overlap the encoder ----
        cp_wih = pltpu.make_async_copy(dec_wih_hbm, dec_wih_vmem, dma_sem.at[0])
        cp_whh = pltpu.make_async_copy(dec_whh_hbm, dec_whh_vmem, dma_sem.at[1])
        cp_wih.start()
        cp_whh.start()

        # ---- hoisted encoder input projection as a lane-dense MXU matmul ----
        # f32 operands (K is only 8, multi-pass f32 cost is negligible) so the
        # raw input is never quantized; result staged in VMEM scratch.
        inproj_scr[...] = (
            jnp.dot(x_ref[...], enc_wih_ref[...],
                    preferred_element_type=jnp.float32)
            + enc_b_ref[...])

        enc_whh = enc_whh_ref[...]          # (HP, 4HP) mxu dtype, loaded once

        h = jnp.zeros((B, HP), jnp.float32)
        c = jnp.zeros((B, HP), jnp.float32)

        # ---- encoder LSTM over T timesteps (static & small -> fully unrolled) ----
        for t in range(T):
            gates = inproj_scr[pl.ds(t * B, B), :]
            if t > 0:   # h == 0 at t == 0: skip the zero-contribution MXU op
                gates = gates + jnp.dot(h.astype(mxu_dtype), enc_whh,
                                        preferred_element_type=jnp.float32)
            h, c = lstm_cell(gates, c)

        # relu(encoder_out)[:, -1] == relu(last hidden state)
        dec_in = jnp.maximum(h, 0.0)                              # (B, HP)

        # decoder input is identical at both steps -> hoist its projection (+ bias)
        cp_wih.wait()                                             # W_ih now resident
        in_proj = (jnp.dot(dec_in.astype(mxu_dtype), dec_wih_vmem[...],
                           preferred_element_type=jnp.float32)
                   + dec_b_ref[...])                              # (B, 4HP)

        h = jnp.zeros((B, HP), jnp.float32)
        c = jnp.zeros((B, HP), jnp.float32)

        # ---- decoder LSTM (2 steps) ----
        hs = []
        for t in range(DEC_STEPS):
            gates = in_proj
            if t == 1:
                cp_whh.wait()                                     # W_hh first needed here
            if t > 0:   # h == 0 at t == 0: skip the zero-contribution MXU op
                gates = gates + jnp.dot(h.astype(mxu_dtype), dec_whh_vmem[...],
                                        preferred_element_type=jnp.float32)
            h, c = lstm_cell(gates, c)
            hs.append(jnp.maximum(h, 0.0))                        # relu(h_t)

        # ---- tail Linear(100,1): one VPU multiply + one lane reduce + one store ----
        stacked = jnp.concatenate(hs, axis=0)                     # (DEC_STEPS*B, HP)
        out_ref[...] = (jnp.sum(stacked * tail_w_ref[...], axis=-1, keepdims=True)
                        + tail_b_ref[...])                        # (DEC_STEPS*B, 1)

    return kernel


# --------------------------- weight layout helpers ----------------------------
def _pad_gate_cols(w_t):
    """(in_dim, 4*H) -> (in_dim, 4*HP): each gate into its own 128-lane group."""
    in_dim = w_t.shape[0]
    g = w_t.reshape(in_dim, 4, HIDDEN)
    g = jnp.pad(g, ((0, 0), (0, 0), (0, HIDDEN_PAD - HIDDEN)))
    return g.reshape(in_dim, 4 * HIDDEN_PAD)


def _pad_rows(w, rows):
    return jnp.pad(w, ((0, rows - w.shape[0]), (0, 0)))


# ------------------------------ wrapper --------------------------------------
def net_forward(x, params, mxu_dtype=jnp.bfloat16):
    """x: (B, T, 1) float32 (PyTorch batch_first layout). Returns (B, 2, 1)."""
    B, T, in_dim = x.shape
    assert in_dim == 1
    H, HP = HIDDEN, HIDDEN_PAD
    f32 = jnp.float32

    # Time-major, batch sublane-padded to a multiple of 8, flattened to
    # (T*B_pad, K_IN) with the single input feature in column 0 (rest zeros)
    # so the encoder input projection is an aligned (T*B_pad,8)x(8,4HP) matmul.
    B_pad = ((B + 7) // 8) * 8
    x_tb = jnp.pad(x[..., 0].astype(f32).T, ((0, 0), (0, B_pad - B)))      # (T, B_pad)
    x2d = jnp.pad(x_tb.reshape(T * B_pad, 1), ((0, 0), (0, K_IN - 1)))     # (T*B_pad, 8)

    enc_wih = _pad_rows(_pad_gate_cols(params["enc_w_ih"].T), K_IN).astype(f32)   # (8, 4HP)
    enc_whh = _pad_rows(_pad_gate_cols(params["enc_w_hh"].T), HP).astype(mxu_dtype)
    enc_b = _pad_gate_cols((params["enc_b_ih"] + params["enc_b_hh"])[None, :]).astype(f32)
    dec_wih = _pad_rows(_pad_gate_cols(params["dec_w_ih"].T), HP).astype(mxu_dtype)
    dec_whh = _pad_rows(_pad_gate_cols(params["dec_w_hh"].T), HP).astype(mxu_dtype)
    dec_b = _pad_gate_cols((params["dec_b_ih"] + params["dec_b_hh"])[None, :]).astype(f32)
    tail_w = jnp.pad(params["tail_w"], ((0, 0), (0, HP - H))).astype(f32)          # (1, HP)
    tail_b = params["tail_b"][None, :].astype(f32)                                 # (1, 1)

    vmem = pl.BlockSpec(memory_space=pltpu.MemorySpace.VMEM)
    hbm = pl.BlockSpec(memory_space=pl.ANY)     # decoder weights: manual overlapped DMA

    kernel = _make_kernel(T, B_pad, mxu_dtype)
    out = pl.pallas_call(
        kernel,
        out_shape=jax.ShapeDtypeStruct((DEC_STEPS * B_pad, 1), jnp.float32),
        in_specs=[vmem, vmem, vmem, vmem, hbm, hbm, vmem, vmem, vmem],
        out_specs=vmem,
        scratch_shapes=[
            pltpu.VMEM((T * B_pad, 4 * HP), jnp.float32),   # staged input projection
            pltpu.VMEM((HP, 4 * HP), mxu_dtype),            # decoder W_ih landing buffer
            pltpu.VMEM((HP, 4 * HP), mxu_dtype),            # decoder W_hh landing buffer
            pltpu.SemaphoreType.DMA((2,)),
        ],
    )(x2d, enc_wih, enc_whh, enc_b, dec_wih, dec_whh, dec_b, tail_w, tail_b)

    out = out.reshape(DEC_STEPS, B_pad, 1)
    return jnp.transpose(out, (1, 0, 2))[:B]                  # (B, 2, 1)


# --------------------------- pure-JAX reference -------------------------------
def _lstm_ref(x_seq, w_ih, w_hh, b_ih, b_hh):
    B = x_seq.shape[0]
    H = w_hh.shape[1]

    def step(carry, x_t):
        h, c = carry
        gates = x_t @ w_ih.T + b_ih + h @ w_hh.T + b_hh
        i, f, g, o = jnp.split(gates, 4, axis=-1)
        i, f, g, o = jax.nn.sigmoid(i), jax.nn.sigmoid(f), jnp.tanh(g), jax.nn.sigmoid(o)
        c = f * c + i * g
        h = o * jnp.tanh(c)
        return (h, c), h

    h0 = jnp.zeros((B, H), jnp.float32)
    c0 = jnp.zeros((B, H), jnp.float32)
    _, hs = lax.scan(step, (h0, c0), jnp.swapaxes(x_seq, 0, 1))
    return jnp.swapaxes(hs, 0, 1)                             # (B, T, H)


def net_forward_ref(x, p):
    y = _lstm_ref(x, p["enc_w_ih"], p["enc_w_hh"], p["enc_b_ih"], p["enc_b_hh"])
    y = jnp.maximum(y, 0.0)
    y = y[:, -1:]
    y = jnp.tile(y, (1, DEC_STEPS, 1))
    y = _lstm_ref(y, p["dec_w_ih"], p["dec_w_hh"], p["dec_b_ih"], p["dec_b_hh"])
    y = jnp.maximum(y, 0.0)
    return y @ p["tail_w"].T + p["tail_b"]                    # (B, 2, 1)


# --------------------------- deterministic init --------------------------------
def init_params(key):
    H = HIDDEN
    k = 1.0 / np.sqrt(H)                                      # PyTorch default init range
    keys = jax.random.split(key, 10)
    u = lambda kk, shape: jax.random.uniform(kk, shape, jnp.float32, -k, k)
    return {
        "enc_w_ih": u(keys[0], (4 * H, 1)),
        "enc_w_hh": u(keys[1], (4 * H, H)),
        "enc_b_ih": u(keys[2], (4 * H,)),
        "enc_b_hh": u(keys[3], (4 * H,)),
        "dec_w_ih": u(keys[4], (4 * H, H)),
        "dec_w_hh": u(keys[5], (4 * H, H)),
        "dec_b_ih": u(keys[6], (4 * H,)),
        "dec_b_hh": u(keys[7], (4 * H,)),
        "tail_w": u(keys[8], (1, H)),
        "tail_b": u(keys[9], (1,)),
    }


if __name__ == "__main__":
    key = jax.random.PRNGKey(0)
    pkey, xkey = jax.random.split(key)
    params = init_params(pkey)

    B, T = 2, 8
    x = jax.random.normal(xkey, (B, T, 1), jnp.float32)       # (batch, seq, 1)

    ref = jax.block_until_ready(net_forward_ref(x, params))

    # f32 MXU-operand path: tight check against the f32 reference.
    out_f32 = jax.block_until_ready(net_forward(x, params, mxu_dtype=jnp.float32))
    assert out_f32.shape == (B, DEC_STEPS, 1), out_f32.shape
    np.testing.assert_allclose(np.asarray(out_f32), np.asarray(ref), rtol=1e-5, atol=1e-5)

    # bf16 MXU-operand default path (all chips; f32 accumulation & gate math).
    out_bf16 = jax.block_until_ready(net_forward(x, params))
    assert out_bf16.shape == (B, DEC_STEPS, 1), out_bf16.shape
    np.testing.assert_allclose(np.asarray(out_bf16), np.asarray(ref), rtol=5e-2, atol=5e-2)

    print("KERNEL_OK")
</pallas_src>

<mosaic_0001>
module attributes {stable_mosaic.version = 11 : i64} {
  func.func @kernel(%arg0: memref<64x8xf32, #tpu.memory_space<vmem>>, %arg1: memref<8x512xf32, #tpu.memory_space<vmem>>, %arg2: memref<128x512xf32, #tpu.memory_space<vmem>>, %arg3: memref<1x512xf32, #tpu.memory_space<vmem>>, %arg4: memref<128x512xf32, #tpu.memory_space<any>>, %arg5: memref<128x512xf32, #tpu.memory_space<any>>, %arg6: memref<1x512xf32, #tpu.memory_space<vmem>>, %arg7: memref<1x128xf32, #tpu.memory_space<vmem>>, %arg8: memref<1x1xf32, #tpu.memory_space<vmem>>, %arg9: memref<16x1xf32, #tpu.memory_space<vmem>>, %arg10: memref<64x512xf32, #tpu.memory_space<vmem>>, %arg11: memref<128x512xf32, #tpu.memory_space<vmem>>, %arg12: memref<128x512xf32, #tpu.memory_space<vmem>>, %arg13: memref<2x!tpu.dma_semaphore, #tpu.memory_space<semaphore_mem>>) attributes {dimension_semantics = [], scalar_prefetch = 0 : i64, scratch_operands = 4 : i64, tpu.core_type = #tpu.core_type<tc>} {
    %c0_i32 = arith.constant 0 : i32
    %0 = tpu.memref_slice %arg13[%c0_i32] : memref<2x!tpu.dma_semaphore, #tpu.memory_space<semaphore_mem>> -> memref<1x!tpu.dma_semaphore, #tpu.memory_space<semaphore_mem>>
    %1 = tpu.memref_squeeze %0 : memref<1x!tpu.dma_semaphore, #tpu.memory_space<semaphore_mem>> -> memref<!tpu.dma_semaphore, #tpu.memory_space<semaphore_mem>>
    tpu.enqueue_dma source(%arg4 : memref<128x512xf32, #tpu.memory_space<any>>) target(%arg11 : memref<128x512xf32, #tpu.memory_space<vmem>>) target_semaphore(%1 : memref<!tpu.dma_semaphore, #tpu.memory_space<semaphore_mem>>)
    %c1_i32 = arith.constant 1 : i32
    %2 = tpu.memref_slice %arg13[%c1_i32] : memref<2x!tpu.dma_semaphore, #tpu.memory_space<semaphore_mem>> -> memref<1x!tpu.dma_semaphore, #tpu.memory_space<semaphore_mem>>
    %3 = tpu.memref_squeeze %2 : memref<1x!tpu.dma_semaphore, #tpu.memory_space<semaphore_mem>> -> memref<!tpu.dma_semaphore, #tpu.memory_space<semaphore_mem>>
    tpu.enqueue_dma source(%arg5 : memref<128x512xf32, #tpu.memory_space<any>>) target(%arg12 : memref<128x512xf32, #tpu.memory_space<vmem>>) target_semaphore(%3 : memref<!tpu.dma_semaphore, #tpu.memory_space<semaphore_mem>>)
    %c0 = arith.constant 0 : index
    %c0_0 = arith.constant 0 : index
    %4 = vector.load %arg0[%c0, %c0_0] : memref<64x8xf32, #tpu.memory_space<vmem>>, vector<64x8xf32>
    %c0_1 = arith.constant 0 : index
    %c0_2 = arith.constant 0 : index
    %5 = vector.load %arg1[%c0_1, %c0_2] : memref<8x512xf32, #tpu.memory_space<vmem>>, vector<8x512xf32>
    %cst = arith.constant dense<0.000000e+00> : vector<64x512xf32>
    %6 = tpu.matmul %4, %5, %cst {dimension_numbers = #tpu.dot_dimension_numbers<[1], [0], [0], [1], [0, 0, 1, 1], [], []>} : vector<64x8xf32>, vector<8x512xf32>, vector<64x512xf32> -> vector<64x512xf32>
    %c0_3 = arith.constant 0 : index
    %c0_4 = arith.constant 0 : index
    %7 = vector.load %arg3[%c0_3, %c0_4] : memref<1x512xf32, #tpu.memory_space<vmem>>, vector<1x512xf32>
    %8 = vector.broadcast %7 : vector<1x512xf32> to vector<64x512xf32>
    %9 = arith.addf %6, %8 : vector<64x512xf32>
    %c0_5 = arith.constant 0 : index
    %c0_6 = arith.constant 0 : index
    %10 = vector.load %arg10[%c0_5, %c0_6] : memref<64x512xf32, #tpu.memory_space<vmem>>, vector<64x512xf32>
    tpu.vector_store %arg10[%c0_5, %c0_6], %9 {strides = array<i32>} : memref<64x512xf32, #tpu.memory_space<vmem>>, vector<64x512xf32>,
    %c0_7 = arith.constant 0 : index
    %c0_8 = arith.constant 0 : index
    %11 = vector.load %arg2[%c0_7, %c0_8] : memref<128x512xf32, #tpu.memory_space<vmem>>, vector<128x512xf32>
    %cst_9 = arith.constant 0.000000e+00 : f32
    %12 = vector.broadcast %cst_9 : f32 to vector<8x128xf32>
    %c0_10 = arith.constant 0 : index
    %c0_11 = arith.constant 0 : index
    %13 = vector.load %arg10[%c0_10, %c0_11] : memref<64x512xf32, #tpu.memory_space<vmem>>, vector<8x512xf32>
    %14 = vector.extract_strided_slice %13 {offsets = [0, 0], sizes = [8, 128], strides = [1, 1]} : vector<8x512xf32> to vector<8x128xf32>
    %15 = arith.negf %14 : vector<8x128xf32>
    %16 = math.exp %15 : vector<8x128xf32>
    %cst_12 = arith.constant 1.000000e+00 : f32
    %17 = vector.broadcast %cst_12 : f32 to vector<8x128xf32>
    %18 = arith.addf %17, %16 : vector<8x128xf32>
    %19 = arith.divf %17, %18 : vector<8x128xf32>
    %20 = vector.extract_strided_slice %13 {offsets = [0, 128], sizes = [8, 128], strides = [1, 1]} : vector<8x512xf32> to vector<8x128xf32>
    %21 = arith.negf %20 : vector<8x128xf32>
    %22 = math.exp %21 : vector<8x128xf32>
    %cst_13 = arith.constant 1.000000e+00 : f32
    %23 = vector.broadcast %cst_13 : f32 to vector<8x128xf32>
    %24 = arith.addf %23, %22 : vector<8x128xf32>
    %25 = arith.divf %23, %24 : vector<8x128xf32>
    %26 = vector.extract_strided_slice %13 {offsets = [0, 256], sizes = [8, 128], strides = [1, 1]} : vector<8x512xf32> to vector<8x128xf32>
    %27 = math.tanh %26 : vector<8x128xf32>
    %28 = vector.extract_strided_slice %13 {offsets = [0, 384], sizes = [8, 128], strides = [1, 1]} : vector<8x512xf32> to vector<8x128xf32>
    %29 = arith.negf %28 : vector<8x128xf32>
    %30 = math.exp %29 : vector<8x128xf32>
    %cst_14 = arith.constant 1.000000e+00 : f32
    %31 = vector.broadcast %cst_14 : f32 to vector<8x128xf32>
    %32 = arith.addf %31, %30 : vector<8x128xf32>
    %33 = arith.divf %31, %32 : vector<8x128xf32>
    %34 = arith.mulf %25, %12 : vector<8x128xf32>
    %35 = arith.mulf %19, %27 : vector<8x128xf32>
    %36 = arith.addf %34, %35 : vector<8x128xf32>
    %37 = math.tanh %36 : vector<8x128xf32>
    %38 = arith.mulf %33, %37 : vector<8x128xf32>
    %c8 = arith.constant 8 : index
    %c0_15 = arith.constant 0 : index
    %39 = vector.load %arg10[%c8, %c0_15] : memref<64x512xf32, #tpu.memory_space<vmem>>, vector<8x512xf32>
    %cst_16 = arith.constant dense<0.000000e+00> : vector<8x512xf32>
    %40 = tpu.matmul %38, %11, %cst_16 {dimension_numbers = #tpu.dot_dimension_numbers<[1], [0], [0], [1], [0, 0, 1, 1], [], []>} : vector<8x128xf32>, vector<128x512xf32>, vector<8x512xf32> -> vector<8x512xf32>
    %41 = arith.addf %39, %40 : vector<8x512xf32>
    %42 = vector.extract_strided_slice %41 {offsets = [0, 0], sizes = [8, 128], strides = [1, 1]} : vector<8x512xf32> to vector<8x128xf32>
    %43 = arith.negf %42 : vector<8x128xf32>
    %44 = math.exp %43 : vector<8x128xf32>
    %cst_17 = arith.constant 1.000000e+00 : f32
    %45 = vector.broadcast %cst_17 : f32 to vector<8x128xf32>
    %46 = arith.addf %45, %44 : vector<8x128xf32>
    %47 = arith.divf %45, %46 : vector<8x128xf32>
    %48 = vector.extract_strided_slice %41 {offsets = [0, 128], sizes = [8, 128], strides = [1, 1]} : vector<8x512xf32> to vector<8x128xf32>
    %49 = arith.negf %48 : vector<8x128xf32>
    %50 = math.exp %49 : vector<8x128xf32>
    %cst_18 = arith.constant 1.000000e+00 : f32
    %51 = vector.broadcast %cst_18 : f32 to vector<8x128xf32>
    %52 = arith.addf %51, %50 : vector<8x128xf32>
    %53 = arith.divf %51, %52 : vector<8x128xf32>
    %54 = vector.extract_strided_slice %41 {offsets = [0, 256], sizes = [8, 128], strides = [1, 1]} : vector<8x512xf32> to vector<8x128xf32>
    %55 = math.tanh %54 : vector<8x128xf32>
    %56 = vector.extract_strided_slice %41 {offsets = [0, 384], sizes = [8, 128], strides = [1, 1]} : vector<8x512xf32> to vector<8x128xf32>
    %57 = arith.negf %56 : vector<8x128xf32>
    %58 = math.exp %57 : vector<8x128xf32>
    %cst_19 = arith.constant 1.000000e+00 : f32
    %59 = vector.broadcast %cst_19 : f32 to vector<8x128xf32>
    %60 = arith.addf %59, %58 : vector<8x128xf32>
    %61 = arith.divf %59, %60 : vector<8x128xf32>
    %62 = arith.mulf %53, %36 : vector<8x128xf32>
    %63 = arith.mulf %47, %55 : vector<8x128xf32>
    %64 = arith.addf %62, %63 : vector<8x128xf32>
    %65 = math.tanh %64 : vector<8x128xf32>
    %66 = arith.mulf %61, %65 : vector<8x128xf32>
    %c16 = arith.constant 16 : index
    %c0_20 = arith.constant 0 : index
    %67 = vector.load %arg10[%c16, %c0_20] : memref<64x512xf32, #tpu.memory_space<vmem>>, vector<8x512xf32>
    %cst_21 = arith.constant dense<0.000000e+00> : vector<8x512xf32>
    %68 = tpu.matmul %66, %11, %cst_21 {dimension_numbers = #tpu.dot_dimension_numbers<[1], [0], [0], [1], [0, 0, 1, 1], [], []>} : vector<8x128xf32>, vector<128x512xf32>, vector<8x512xf32> -> vector<8x512xf32>
    %69 = arith.addf %67, %68 : vector<8x512xf32>
    %70 = vector.extract_strided_slice %69 {offsets = [0, 0], sizes = [8, 128], strides = [1, 1]} : vector<8x512xf32> to vector<8x128xf32>
    %71 = arith.negf %70 : vector<8x128xf32>
    %72 = math.exp %71 : vector<8x128xf32>
    %cst_22 = arith.constant 1.000000e+00 : f32
    %73 = vector.broadcast %cst_22 : f32 to vector<8x128xf32>
    %74 = arith.addf %73, %72 : vector<8x128xf32>
    %75 = arith.divf %73, %74 : vector<8x128xf32>
    %76 = vector.extract_strided_slice %69 {offsets = [0, 128], sizes = [8, 128], strides = [1, 1]} : vector<8x512xf32> to vector<8x128xf32>
    %77 = arith.negf %76 : vector<8x128xf32>
    %78 = math.exp %77 : vector<8x128xf32>
    %cst_23 = arith.constant 1.000000e+00 : f32
    %79 = vector.broadcast %cst_23 : f32 to vector<8x128xf32>
    %80 = arith.addf %79, %78 : vector<8x128xf32>
    %81 = arith.divf %79, %80 : vector<8x128xf32>
    %82 = vector.extract_strided_slice %69 {offsets = [0, 256], sizes = [8, 128], strides = [1, 1]} : vector<8x512xf32> to vector<8x128xf32>
    %83 = math.tanh %82 : vector<8x128xf32>
    %84 = vector.extract_strided_slice %69 {offsets = [0, 384], sizes = [8, 128], strides = [1, 1]} : vector<8x512xf32> to vector<8x128xf32>
    %85 = arith.negf %84 : vector<8x128xf32>
    %86 = math.exp %85 : vector<8x128xf32>
    %cst_24 = arith.constant 1.000000e+00 : f32
    %87 = vector.broadcast %cst_24 : f32 to vector<8x128xf32>
    %88 = arith.addf %87, %86 : vector<8x128xf32>
    %89 = arith.divf %87, %88 : vector<8x128xf32>
    %90 = arith.mulf %81, %64 : vector<8x128xf32>
    %91 = arith.mulf %75, %83 : vector<8x128xf32>
    %92 = arith.addf %90, %91 : vector<8x128xf32>
    %93 = math.tanh %92 : vector<8x128xf32>
    %94 = arith.mulf %89, %93 : vector<8x128xf32>
    %c24 = arith.constant 24 : index
    %c0_25 = arith.constant 0 : index
    %95 = vector.load %arg10[%c24, %c0_25] : memref<64x512xf32, #tpu.memory_space<vmem>>, vector<8x512xf32>
    %cst_26 = arith.constant dense<0.000000e+00> : vector<8x512xf32>
    %96 = tpu.matmul %94, %11, %cst_26 {dimension_numbers = #tpu.dot_dimension_numbers<[1], [0], [0], [1], [0, 0, 1, 1], [], []>} : vector<8x128xf32>, vector<128x512xf32>, vector<8x512xf32> -> vector<8x512xf32>
    %97 = arith.addf %95, %96 : vector<8x512xf32>
    %98 = vector.extract_strided_slice %97 {offsets = [0, 0], sizes = [8, 128], strides = [1, 1]} : vector<8x512xf32> to vector<8x128xf32>
    %99 = arith.negf %98 : vector<8x128xf32>
    %100 = math.exp %99 : vector<8x128xf32>
    %cst_27 = arith.constant 1.000000e+00 : f32
    %101 = vector.broadcast %cst_27 : f32 to vector<8x128xf32>
    %102 = arith.addf %101, %100 : vector<8x128xf32>
    %103 = arith.divf %101, %102 : vector<8x128xf32>
    %104 = vector.extract_strided_slice %97 {offsets = [0, 128], sizes = [8, 128], strides = [1, 1]} : vector<8x512xf32> to vector<8x128xf32>
    %105 = arith.negf %104 : vector<8x128xf32>
    %106 = math.exp %105 : vector<8x128xf32>
    %cst_28 = arith.constant 1.000000e+00 : f32
    %107 = vector.broadcast %cst_28 : f32 to vector<8x128xf32>
    %108 = arith.addf %107, %106 : vector<8x128xf32>
    %109 = arith.divf %107, %108 : vector<8x128xf32>
    %110 = vector.extract_strided_slice %97 {offsets = [0, 256], sizes = [8, 128], strides = [1, 1]} : vector<8x512xf32> to vector<8x128xf32>
    %111 = math.tanh %110 : vector<8x128xf32>
    %112 = vector.extract_strided_slice %97 {offsets = [0, 384], sizes = [8, 128], strides = [1, 1]} : vector<8x512xf32> to vector<8x128xf32>
    %113 = arith.negf %112 : vector<8x128xf32>
    %114 = math.exp %113 : vector<8x128xf32>
    %cst_29 = arith.constant 1.000000e+00 : f32
    %115 = vector.broadcast %cst_29 : f32 to vector<8x128xf32>
    %116 = arith.addf %115, %114 : vector<8x128xf32>
    %117 = arith.divf %115, %116 : vector<8x128xf32>
    %118 = arith.mulf %109, %92 : vector<8x128xf32>
    %119 = arith.mulf %103, %111 : vector<8x128xf32>
    %120 = arith.addf %118, %119 : vector<8x128xf32>
    %121 = math.tanh %120 : vector<8x128xf32>
    %122 = arith.mulf %117, %121 : vector<8x128xf32>
    %c32 = arith.constant 32 : index
    %c0_30 = arith.constant 0 : index
    %123 = vector.load %arg10[%c32, %c0_30] : memref<64x512xf32, #tpu.memory_space<vmem>>, vector<8x512xf32>
    %cst_31 = arith.constant dense<0.000000e+00> : vector<8x512xf32>
    %124 = tpu.matmul %122, %11, %cst_31 {dimension_numbers = #tpu.dot_dimension_numbers<[1], [0], [0], [1], [0, 0, 1, 1], [], []>} : vector<8x128xf32>, vector<128x512xf32>, vector<8x512xf32> -> vector<8x512xf32>
    %125 = arith.addf %123, %124 : vector<8x512xf32>
    %126 = vector.extract_strided_slice %125 {offsets = [0, 0], sizes = [8, 128], strides = [1, 1]} : vector<8x512xf32> to vector<8x128xf32>
    %127 = arith.negf %126 : vector<8x128xf32>
    %128 = math.exp %127 : vector<8x128xf32>
    %cst_32 = arith.constant 1.000000e+00 : f32
    %129 = vector.broadcast %cst_32 : f32 to vector<8x128xf32>
    %130 = arith.addf %129, %128 : vector<8x128xf32>
    %131 = arith.divf %129, %130 : vector<8x128xf32>
    %132 = vector.extract_strided_slice %125 {offsets = [0, 128], sizes = [8, 128], strides = [1, 1]} : vector<8x512xf32> to vector<8x128xf32>
    %133 = arith.negf %132 : vector<8x128xf32>
    %134 = math.exp %133 : vector<8x128xf32>
    %cst_33 = arith.constant 1.000000e+00 : f32
    %135 = vector.broadcast %cst_33 : f32 to vector<8x128xf32>
    %136 = arith.addf %135, %134 : vector<8x128xf32>
    %137 = arith.divf %135, %136 : vector<8x128xf32>
    %138 = vector.extract_strided_slice %125 {offsets = [0, 256], sizes = [8, 128], strides = [1, 1]} : vector<8x512xf32> to vector<8x128xf32>
    %139 = math.tanh %138 : vector<8x128xf32>
    %140 = vector.extract_strided_slice %125 {offsets = [0, 384], sizes = [8, 128], strides = [1, 1]} : vector<8x512xf32> to vector<8x128xf32>
    %141 = arith.negf %140 : vector<8x128xf32>
    %142 = math.exp %141 : vector<8x128xf32>
    %cst_34 = arith.constant 1.000000e+00 : f32
    %143 = vector.broadcast %cst_34 : f32 to vector<8x128xf32>
    %144 = arith.addf %143, %142 : vector<8x128xf32>
    %145 = arith.divf %143, %144 : vector<8x128xf32>
    %146 = arith.mulf %137, %120 : vector<8x128xf32>
    %147 = arith.mulf %131, %139 : vector<8x128xf32>
    %148 = arith.addf %146, %147 : vector<8x128xf32>
    %149 = math.tanh %148 : vector<8x128xf32>
    %150 = arith.mulf %145, %149 : vector<8x128xf32>
    %c40 = arith.constant 40 : index
    %c0_35 = arith.constant 0 : index
    %151 = vector.load %arg10[%c40, %c0_35] : memref<64x512xf32, #tpu.memory_space<vmem>>, vector<8x512xf32>
    %cst_36 = arith.constant dense<0.000000e+00> : vector<8x512xf32>
    %152 = tpu.matmul %150, %11, %cst_36 {dimension_numbers = #tpu.dot_dimension_numbers<[1], [0], [0], [1], [0, 0, 1, 1], [], []>} : vector<8x128xf32>, vector<128x512xf32>, vector<8x512xf32> -> vector<8x512xf32>
    %153 = arith.addf %151, %152 : vector<8x512xf32>
    %154 = vector.extract_strided_slice %153 {offsets = [0, 0], sizes = [8, 128], strides = [1, 1]} : vector<8x512xf32> to vector<8x128xf32>
    %155 = arith.negf %154 : vector<8x128xf32>
    %156 = math.exp %155 : vector<8x128xf32>
    %cst_37 = arith.constant 1.000000e+00 : f32
    %157 = vector.broadcast %cst_37 : f32 to vector<8x128xf32>
    %158 = arith.addf %157, %156 : vector<8x128xf32>
    %159 = arith.divf %157, %158 : vector<8x128xf32>
    %160 = vector.extract_strided_slice %153 {offsets = [0, 128], sizes = [8, 128], strides = [1, 1]} : vector<8x512xf32> to vector<8x128xf32>
    %161 = arith.negf %160 : vector<8x128xf32>
    %162 = math.exp %161 : vector<8x128xf32>
    %cst_38 = arith.constant 1.000000e+00 : f32
    %163 = vector.broadcast %cst_38 : f32 to vector<8x128xf32>
    %164 = arith.addf %163, %162 : vector<8x128xf32>
    %165 = arith.divf %163, %164 : vector<8x128xf32>
    %166 = vector.extract_strided_slice %153 {offsets = [0, 256], sizes = [8, 128], strides = [1, 1]} : vector<8x512xf32> to vector<8x128xf32>
    %167 = math.tanh %166 : vector<8x128xf32>
    %168 = vector.extract_strided_slice %153 {offsets = [0, 384], sizes = [8, 128], strides = [1, 1]} : vector<8x512xf32> to vector<8x128xf32>
    %169 = arith.negf %168 : vector<8x128xf32>
    %170 = math.exp %169 : vector<8x128xf32>
    %cst_39 = arith.constant 1.000000e+00 : f32
    %171 = vector.broadcast %cst_39 : f32 to vector<8x128xf32>
    %172 = arith.addf %171, %170 : vector<8x128xf32>
    %173 = arith.divf %171, %172 : vector<8x128xf32>
    %174 = arith.mulf %165, %148 : vector<8x128xf32>
    %175 = arith.mulf %159, %167 : vector<8x128xf32>
    %176 = arith.addf %174, %175 : vector<8x128xf32>
    %177 = math.tanh %176 : vector<8x128xf32>
    %178 = arith.mulf %173, %177 : vector<8x128xf32>
    %c48 = arith.constant 48 : index
    %c0_40 = arith.constant 0 : index
    %179 = vector.load %arg10[%c48, %c0_40] : memref<64x512xf32, #tpu.memory_space<vmem>>, vector<8x512xf32>
    %cst_41 = arith.constant dense<0.000000e+00> : vector<8x512xf32>
    %180 = tpu.matmul %178, %11, %cst_41 {dimension_numbers = #tpu.dot_dimension_numbers<[1], [0], [0], [1], [0, 0, 1, 1], [], []>} : vector<8x128xf32>, vector<128x512xf32>, vector<8x512xf32> -> vector<8x512xf32>
    %181 = arith.addf %179, %180 : vector<8x512xf32>
    %182 = vector.extract_strided_slice %181 {offsets = [0, 0], sizes = [8, 128], strides = [1, 1]} : vector<8x512xf32> to vector<8x128xf32>
    %183 = arith.negf %182 : vector<8x128xf32>
    %184 = math.exp %183 : vector<8x128xf32>
    %cst_42 = arith.constant 1.000000e+00 : f32
    %185 = vector.broadcast %cst_42 : f32 to vector<8x128xf32>
    %186 = arith.addf %185, %184 : vector<8x128xf32>
    %187 = arith.divf %185, %186 : vector<8x128xf32>
    %188 = vector.extract_strided_slice %181 {offsets = [0, 128], sizes = [8, 128], strides = [1, 1]} : vector<8x512xf32> to vector<8x128xf32>
    %189 = arith.negf %188 : vector<8x128xf32>
    %190 = math.exp %189 : vector<8x128xf32>
    %cst_43 = arith.constant 1.000000e+00 : f32
    %191 = vector.broadcast %cst_43 : f32 to vector<8x128xf32>
    %192 = arith.addf %191, %190 : vector<8x128xf32>
    %193 = arith.divf %191, %192 : vector<8x128xf32>
    %194 = vector.extract_strided_slice %181 {offsets = [0, 256], sizes = [8, 128], strides = [1, 1]} : vector<8x512xf32> to vector<8x128xf32>
    %195 = math.tanh %194 : vector<8x128xf32>
    %196 = vector.extract_strided_slice %181 {offsets = [0, 384], sizes = [8, 128], strides = [1, 1]} : vector<8x512xf32> to vector<8x128xf32>
    %197 = arith.negf %196 : vector<8x128xf32>
    %198 = math.exp %197 : vector<8x128xf32>
    %cst_44 = arith.constant 1.000000e+00 : f32
    %199 = vector.broadcast %cst_44 : f32 to vector<8x128xf32>
    %200 = arith.addf %199, %198 : vector<8x128xf32>
    %201 = arith.divf %199, %200 : vector<8x128xf32>
    %202 = arith.mulf %193, %176 : vector<8x128xf32>
    %203 = arith.mulf %187, %195 : vector<8x128xf32>
    %204 = arith.addf %202, %203 : vector<8x128xf32>
    %205 = math.tanh %204 : vector<8x128xf32>
    %206 = arith.mulf %201, %205 : vector<8x128xf32>
    %c56 = arith.constant 56 : index
    %c0_45 = arith.constant 0 : index
    %207 = vector.load %arg10[%c56, %c0_45] : memref<64x512xf32, #tpu.memory_space<vmem>>, vector<8x512xf32>
    %cst_46 = arith.constant dense<0.000000e+00> : vector<8x512xf32>
    %208 = tpu.matmul %206, %11, %cst_46 {dimension_numbers = #tpu.dot_dimension_numbers<[1], [0], [0], [1], [0, 0, 1, 1], [], []>} : vector<8x128xf32>, vector<128x512xf32>, vector<8x512xf32> -> vector<8x512xf32>
    %209 = arith.addf %207, %208 : vector<8x512xf32>
    %210 = vector.extract_strided_slice %209 {offsets = [0, 0], sizes = [8, 128], strides = [1, 1]} : vector<8x512xf32> to vector<8x128xf32>
    %211 = arith.negf %210 : vector<8x128xf32>
    %212 = math.exp %211 : vector<8x128xf32>
    %cst_47 = arith.constant 1.000000e+00 : f32
    %213 = vector.broadcast %cst_47 : f32 to vector<8x128xf32>
    %214 = arith.addf %213, %212 : vector<8x128xf32>
    %215 = arith.divf %213, %214 : vector<8x128xf32>
    %216 = vector.extract_strided_slice %209 {offsets = [0, 128], sizes = [8, 128], strides = [1, 1]} : vector<8x512xf32> to vector<8x128xf32>
    %217 = arith.negf %216 : vector<8x128xf32>
    %218 = math.exp %217 : vector<8x128xf32>
    %cst_48 = arith.constant 1.000000e+00 : f32
    %219 = vector.broadcast %cst_48 : f32 to vector<8x128xf32>
    %220 = arith.addf %219, %218 : vector<8x128xf32>
    %221 = arith.divf %219, %220 : vector<8x128xf32>
    %222 = vector.extract_strided_slice %209 {offsets = [0, 256], sizes = [8, 128], strides = [1, 1]} : vector<8x512xf32> to vector<8x128xf32>
    %223 = math.tanh %222 : vector<8x128xf32>
    %224 = vector.extract_strided_slice %209 {offsets = [0, 384], sizes = [8, 128], strides = [1, 1]} : vector<8x512xf32> to vector<8x128xf32>
    %225 = arith.negf %224 : vector<8x128xf32>
    %226 = math.exp %225 : vector<8x128xf32>
    %cst_49 = arith.constant 1.000000e+00 : f32
    %227 = vector.broadcast %cst_49 : f32 to vector<8x128xf32>
    %228 = arith.addf %227, %226 : vector<8x128xf32>
    %229 = arith.divf %227, %228 : vector<8x128xf32>
    %230 = arith.mulf %221, %204 : vector<8x128xf32>
    %231 = arith.mulf %215, %223 : vector<8x128xf32>
    %232 = arith.addf %230, %231 : vector<8x128xf32>
    %233 = math.tanh %232 : vector<8x128xf32>
    %234 = arith.mulf %229, %233 : vector<8x128xf32>
    %cst_50 = arith.constant 0.000000e+00 : f32
    %235 = vector.broadcast %cst_50 : f32 to vector<8x128xf32>
    %236 = arith.maximumf %234, %235 : vector<8x128xf32>
    %c0_i32_51 = arith.constant 0 : i32
    %237 = tpu.memref_slice %arg13[%c0_i32_51] : memref<2x!tpu.dma_semaphore, #tpu.memory_space<semaphore_mem>> -> memref<1x!tpu.dma_semaphore, #tpu.memory_space<semaphore_mem>>
    %238 = tpu.memref_squeeze %237 : memref<1x!tpu.dma_semaphore, #tpu.memory_space<semaphore_mem>> -> memref<!tpu.dma_semaphore, #tpu.memory_space<semaphore_mem>>
    tpu.wait_dma2 semaphore(%238 : memref<!tpu.dma_semaphore, #tpu.memory_space<semaphore_mem>>) src(%arg4 : memref<128x512xf32, #tpu.memory_space<any>>) dst(%arg11 : memref<128x512xf32, #tpu.memory_space<vmem>>)
    %c0_52 = arith.constant 0 : index
    %c0_53 = arith.constant 0 : index
    %239 = vector.load %arg11[%c0_52, %c0_53] : memref<128x512xf32, #tpu.memory_space<vmem>>, vector<128x512xf32>
    %cst_54 = arith.constant dense<0.000000e+00> : vector<8x512xf32>
    %240 = tpu.matmul %236, %239, %cst_54 {dimension_numbers = #tpu.dot_dimension_numbers<[1], [0], [0], [1], [0, 0, 1, 1], [], []>} : vector<8x128xf32>, vector<128x512xf32>, vector<8x512xf32> -> vector<8x512xf32>
    %c0_55 = arith.constant 0 : index
    %c0_56 = arith.constant 0 : index
    %241 = vector.load %arg6[%c0_55, %c0_56] : memref<1x512xf32, #tpu.memory_space<vmem>>, vector<1x512xf32>
    %242 = vector.broadcast %241 : vector<1x512xf32> to vector<8x512xf32>
    %243 = arith.addf %240, %242 : vector<8x512xf32>
    %cst_57 = arith.constant 0.000000e+00 : f32
    %244 = vector.broadcast %cst_57 : f32 to vector<8x128xf32>
    %245 = vector.extract_strided_slice %243 {offsets = [0, 0], sizes = [8, 128], strides = [1, 1]} : vector<8x512xf32> to vector<8x128xf32>
    %246 = arith.negf %245 : vector<8x128xf32>
    %247 = math.exp %246 : vector<8x128xf32>
    %cst_58 = arith.constant 1.000000e+00 : f32
    %248 = vector.broadcast %cst_58 : f32 to vector<8x128xf32>
    %249 = arith.addf %248, %247 : vector<8x128xf32>
    %250 = arith.divf %248, %249 : vector<8x128xf32>
    %251 = vector.extract_strided_slice %243 {offsets = [0, 128], sizes = [8, 128], strides = [1, 1]} : vector<8x512xf32> to vector<8x128xf32>
    %252 = arith.negf %251 : vector<8x128xf32>
    %253 = math.exp %252 : vector<8x128xf32>
    %cst_59 = arith.constant 1.000000e+00 : f32
    %254 = vector.broadcast %cst_59 : f32 to vector<8x128xf32>
    %255 = arith.addf %254, %253 : vector<8x128xf32>
    %256 = arith.divf %254, %255 : vector<8x128xf32>
    %257 = vector.extract_strided_slice %243 {offsets = [0, 256], sizes = [8, 128], strides = [1, 1]} : vector<8x512xf32> to vector<8x128xf32>
    %258 = math.tanh %257 : vector<8x128xf32>
    %259 = vector.extract_strided_slice %243 {offsets = [0, 384], sizes = [8, 128], strides = [1, 1]} : vector<8x512xf32> to vector<8x128xf32>
    %260 = arith.negf %259 : vector<8x128xf32>
    %261 = math.exp %260 : vector<8x128xf32>
    %cst_60 = arith.constant 1.000000e+00 : f32
    %262 = vector.broadcast %cst_60 : f32 to vector<8x128xf32>
    %263 = arith.addf %262, %261 : vector<8x128xf32>
    %264 = arith.divf %262, %263 : vector<8x128xf32>
    %265 = arith.mulf %256, %244 : vector<8x128xf32>
    %266 = arith.mulf %250, %258 : vector<8x128xf32>
    %267 = arith.addf %265, %266 : vector<8x128xf32>
    %268 = math.tanh %267 : vector<8x128xf32>
    %269 = arith.mulf %264, %268 : vector<8x128xf32>
    %cst_61 = arith.constant 0.000000e+00 : f32
    %270 = vector.broadcast %cst_61 : f32 to vector<8x128xf32>
    %271 = arith.maximumf %269, %270 : vector<8x128xf32>
    %c1_i32_62 = arith.constant 1 : i32
    %272 = tpu.memref_slice %arg13[%c1_i32_62] : memref<2x!tpu.dma_semaphore, #tpu.memory_space<semaphore_mem>> -> memref<1x!tpu.dma_semaphore, #tpu.memory_space<semaphore_mem>>
    %273 = tpu.memref_squeeze %272 : memref<1x!tpu.dma_semaphore, #tpu.memory_space<semaphore_mem>> -> memref<!tpu.dma_semaphore, #tpu.memory_space<semaphore_mem>>
    tpu.wait_dma2 semaphore(%273 : memref<!tpu.dma_semaphore, #tpu.memory_space<semaphore_mem>>) src(%arg5 : memref<128x512xf32, #tpu.memory_space<any>>) dst(%arg12 : memref<128x512xf32, #tpu.memory_space<vmem>>)
    %c0_63 = arith.constant 0 : index
    %c0_64 = arith.constant 0 : index
    %274 = vector.load %arg12[%c0_63, %c0_64] : memref<128x512xf32, #tpu.memory_space<vmem>>, vector<128x512xf32>
    %cst_65 = arith.constant dense<0.000000e+00> : vector<8x512xf32>
    %275 = tpu.matmul %269, %274, %cst_65 {dimension_numbers = #tpu.dot_dimension_numbers<[1], [0], [0], [1], [0, 0, 1, 1], [], []>} : vector<8x128xf32>, vector<128x512xf32>, vector<8x512xf32> -> vector<8x512xf32>
    %276 = arith.addf %243, %275 : vector<8x512xf32>
    %277 = vector.extract_strided_slice %276 {offsets = [0, 0], sizes = [8, 128], strides = [1, 1]} : vector<8x512xf32> to vector<8x128xf32>
    %278 = arith.negf %277 : vector<8x128xf32>
    %279 = math.exp %278 : vector<8x128xf32>
    %cst_66 = arith.constant 1.000000e+00 : f32
    %280 = vector.broadcast %cst_66 : f32 to vector<8x128xf32>
    %281 = arith.addf %280, %279 : vector<8x128xf32>
    %282 = arith.divf %280, %281 : vector<8x128xf32>
    %283 = vector.extract_strided_slice %276 {offsets = [0, 128], sizes = [8, 128], strides = [1, 1]} : vector<8x512xf32> to vector<8x128xf32>
    %284 = arith.negf %283 : vector<8x128xf32>
    %285 = math.exp %284 : vector<8x128xf32>
    %cst_67 = arith.constant 1.000000e+00 : f32
    %286 = vector.broadcast %cst_67 : f32 to vector<8x128xf32>
    %287 = arith.addf %286, %285 : vector<8x128xf32>
    %288 = arith.divf %286, %287 : vector<8x128xf32>
    %289 = vector.extract_strided_slice %276 {offsets = [0, 256], sizes = [8, 128], strides = [1, 1]} : vector<8x512xf32> to vector<8x128xf32>
    %290 = math.tanh %289 : vector<8x128xf32>
    %291 = vector.extract_strided_slice %276 {offsets = [0, 384], sizes = [8, 128], strides = [1, 1]} : vector<8x512xf32> to vector<8x128xf32>
    %292 = arith.negf %291 : vector<8x128xf32>
    %293 = math.exp %292 : vector<8x128xf32>
    %cst_68 = arith.constant 1.000000e+00 : f32
    %294 = vector.broadcast %cst_68 : f32 to vector<8x128xf32>
    %295 = arith.addf %294, %293 : vector<8x128xf32>
    %296 = arith.divf %294, %295 : vector<8x128xf32>
    %297 = arith.mulf %288, %267 : vector<8x128xf32>
    %298 = arith.mulf %282, %290 : vector<8x128xf32>
    %299 = arith.addf %297, %298 : vector<8x128xf32>
    %300 = math.tanh %299 : vector<8x128xf32>
    %301 = arith.mulf %296, %300 : vector<8x128xf32>
    %cst_69 = arith.constant 0.000000e+00 : f32
    %302 = vector.broadcast %cst_69 : f32 to vector<8x128xf32>
    %303 = arith.maximumf %301, %302 : vector<8x128xf32>
    %304 = tpu.concatenate %271, %303 in 0 : vector<8x128xf32>, vector<8x128xf32> -> vector<16x128xf32>
    %c0_70 = arith.constant 0 : index
    %c0_71 = arith.constant 0 : index
    %305 = vector.load %arg7[%c0_70, %c0_71] : memref<1x128xf32, #tpu.memory_space<vmem>>, vector<1x128xf32>
    %306 = vector.broadcast %305 : vector<1x128xf32> to vector<16x128xf32>
    %307 = arith.mulf %304, %306 : vector<16x128xf32>
    %cst_72 = arith.constant dense<0.000000e+00> : vector<16xf32>
    %308 = vector.multi_reduction <add>, %307, %cst_72 [1] : vector<16x128xf32> to vector<16xf32>
    %309 = vector.shape_cast %308 : vector<16xf32> to vector<16x1xf32>
    %c0_73 = arith.constant 0 : index
    %c0_74 = arith.constant 0 : index
    %310 = vector.load %arg8[%c0_73, %c0_74] : memref<1x1xf32, #tpu.memory_space<vmem>>, vector<1x1xf32>
    %311 = vector.broadcast %310 : vector<1x1xf32> to vector<16x1xf32>
    %312 = arith.addf %309, %311 : vector<16x1xf32>
    %c0_75 = arith.constant 0 : index
    %c0_76 = arith.constant 0 : index
    %313 = vector.load %arg9[%c0_75, %c0_76] : memref<16x1xf32, #tpu.memory_space<vmem>>, vector<16x1xf32>
    tpu.vector_store %arg9[%c0_75, %c0_76], %312 {strides = array<i32>} : memref<16x1xf32, #tpu.memory_space<vmem>>, vector<16x1xf32>,
    return
  }
}

</mosaic_0001>

<llo_original>
// kernel: tpu_custom_call.1
$region0: #{tpu_custom_call.1}
  #allocation0 [shape = 'u32[]', space=smem, size = 0x4, offset = 0x4, fixed_abs, tag = 'smem constant byte address 0x4 - core index']
  #allocation1 [shape = 'u32[144,128]{1,0:T(1,128)}', space=vmem, size = 0x12000, scoped, tag = 'internal scratch']
  #allocation2 [shape = 'f32[64,512]{1,0:T(8,128)}', space=vmem, size = 0x20000, scoped, tag = 'scratch operand']
  #allocation3 [shape = 'f32[128,512]{1,0:T(8,128)}', space=vmem, size = 0x40000, scoped, tag = 'scratch operand']
  #allocation4 [shape = 'f32[128,512]{1,0:T(8,128)}', space=vmem, size = 0x40000, scoped, tag = 'scratch operand']
  #allocation5 [shape = 's32[2]{0}', space=sflag, size = 0x8, scoped, tag = 'scratch operand']
  #allocation6 [shape = 'f32[1,1]{1,0:T(1,128)S(1)}', space=vmem, size = 0x200, scoped, tag = 'scoped memory for tpu_custom_call.1']
  #allocation9 [shape = 's32[]', space=sflag, size = 0x4, offset = 0, fixed_abs, tag = 'sflag constant byte address 0x0 - dummy sync flag']
  #allocation10 [shape = 's32[]', space=sflag, size = 0x4, offset = 0, fixed_abs, tag = 'sflag constant byte address 0x0 - dummy sync flag']
  #allocation11 [shape = 'u32[]', space=smem, size = 0x4, offset = 0x44, fixed_abs, tag = 'smem constant byte address 0x44 - assertion arg 0']
  #allocation12 [shape = 'u32[]', space=smem, size = 0x4, offset = 0x48, fixed_abs, tag = 'smem constant byte address 0x48 - assertion arg 1']
  #allocation13 [shape = 's32[]', space=sflag, size = 0x4, offset = 0, fixed_abs, tag = 'sflag constant byte address 0x0 - dummy sync flag']
  #allocation14 [shape = 's32[]', space=sflag, size = 0x4, offset = 0, fixed_abs, tag = 'sflag constant byte address 0x0 - dummy sync flag']
  %s0 = inlined_call_operand.vmem [shape: f32[64,8], index: 0, kind: input, shape index: {}]
  %s1 = inlined_call_operand.vmem [shape: f32[8,512], index: 1, kind: input, shape index: {}]
  %s2 = inlined_call_operand.hbm [shape: f32[128,512], index: 2, kind: input, shape index: {}]
  %s3 = inlined_call_operand.vmem [shape: f32[1,512], index: 3, kind: input, shape index: {}]
  %s4 = inlined_call_operand.hbm [shape: f32[128,512], index: 4, kind: input, shape index: {}]
  %s5 = inlined_call_operand.hbm [shape: f32[128,512], index: 5, kind: input, shape index: {}]
  %s6 = inlined_call_operand.vmem [shape: f32[1,512], index: 6, kind: input, shape index: {}]
  %s7 = inlined_call_operand.vmem [shape: f32[1,128], index: 7, kind: input, shape index: {}]
  %s8 = inlined_call_operand.<no memory space> [shape: f32[1,1], index: 8, kind: input, shape index: {}]
  %s9 = inlined_call_operand.vmem [shape: f32[16,1], index: 9, kind: output, shape index: {}]
  %s10 = sld [smem:[#allocation0]]
  $region50: #{tpu_custom_call.1} parent=0
    _
  %s12 = ssub.s32 1, %s10
  %s13 = scalar_select 0, %s12, %s10
  %v14 = vstv %s8
  %15 = vst [vmem:[#allocation6] sm:$0x1] %v14
  $region1: #{tpu_custom_call.1} parent=0
    #allocation7 [shape = 'u8[262144]{0}', space=vmem, size = 0x40000, scoped, tag = 'input window, operand 2, single buffered']
    #allocation8 [shape = 's32[1]{0}', space=sflag, size = 0x4, scoped, tag = 'scoped memory for tpu_custom_call.1']
    %16 = vsyncpa [#allocation8], 0
    // Predicated region
    $region2: #{tpu_custom_call.1} parent=1 // pred_check
      _
    $region3: #{tpu_custom_call.1} parent=1 // pred_check_branch
      %18 = sbr.rel (0) target = $region5
    $region4: #{tpu_custom_call.1} parent=1 // pred_region
      _
    $region5: #{tpu_custom_call.1} parent=1 // pred_fallthru
      _
    // Predicated region
    $region6: #{tpu_custom_call.1} parent=1 // pred_check
      _
    $region7: #{tpu_custom_call.1} parent=1 // pred_check_branch
      %20 = sbr.rel (0) target = $region9
    $region8: #{tpu_custom_call.1} parent=1 // pred_region
      _
    $region9: #{tpu_custom_call.1} parent=1 // pred_fallthru
      _
    // Predicated region
    $region10: #{tpu_custom_call.1} parent=1 // pred_check
      _
    $region11: #{tpu_custom_call.1} parent=1 // pred_check_branch
      %22 = sbr.rel (0) target = $region13
    $region12: #{tpu_custom_call.1} parent=1 // pred_region
      %s24 = ssub.s32 8192, 8192
      %25 = vsyncadd [#allocation8], %s24
      %s26 = sshll.u32 [#allocation7], 4
      %s27 = int_to_ptr.vmem [resolvable:$true] %s26
      %32 = dma.hbm_to_vmem [thread:$0]  %s2, 8192, %s27, [#allocation8], 512, 512, 32
    $region13: #{tpu_custom_call.1} parent=1 // pred_fallthru
      _
    // Predicated region
    $region14: #{tpu_custom_call.1} parent=1 // pred_check
      _
    $region15: #{tpu_custom_call.1} parent=1 // pred_check_branch
      %34 = sbr.rel (0) target = $region17
    $region16: #{tpu_custom_call.1} parent=1 // pred_region
      _
    $region17: #{tpu_custom_call.1} parent=1 // pred_fallthru
      _
    // Predicated region
    $region18: #{tpu_custom_call.1} parent=1 // pred_check
      _
    $region19: #{tpu_custom_call.1} parent=1 // pred_check_branch
      %36 = sbr.rel (0) target = $region21
    $region20: #{tpu_custom_call.1} parent=1 // pred_region
      _
    $region21: #{tpu_custom_call.1} parent=1 // pred_fallthru
      _
    // Predicated region
    $region22: #{tpu_custom_call.1} parent=1 // pred_check
      _
    $region23: #{tpu_custom_call.1} parent=1 // pred_check_branch
      %38 = sbr.rel (0) target = $region25
    $region24: #{tpu_custom_call.1} parent=1 // pred_region
      _
    $region25: #{tpu_custom_call.1} parent=1 // pred_fallthru
      _
    // Predicated region
    $region26: #{tpu_custom_call.1} parent=1 // pred_check
      _
    $region27: #{tpu_custom_call.1} parent=1 // pred_check_branch
      %40 = sbr.rel (0) target = $region29
    $region28: #{tpu_custom_call.1} parent=1 // pred_region
      _
    $region29: #{tpu_custom_call.1} parent=1 // pred_fallthru
      _
    // Predicated region
    $region30: #{tpu_custom_call.1} parent=1 // pred_check
      _
    $region31: #{tpu_custom_call.1} parent=1 // pred_check_branch
      %42 = sbr.rel (0) target = $region33
    $region32: #{tpu_custom_call.1} parent=1 // pred_region
      %43 = dma.done [#allocation8], 8192
    $region33: #{tpu_custom_call.1} parent=1 // pred_fallthru
      _
    // Predicated region
    $region34: #{tpu_custom_call.1} parent=1 // pred_check
      _
    $region35: #{tpu_custom_call.1} parent=1 // pred_check_branch
      %45 = sbr.rel target = $region37
    $region36: #{tpu_custom_call.1} parent=1 // pred_region
      %46 = sst [smem:[#allocation11]] [#allocation10]
      %47 = sst [smem:[#allocation12]] [#allocation9]
    $region37: #{tpu_custom_call.1} parent=1 // pred_fallthru
      _
    %49 = shalt.err (0)
    %s51 = sshll.u32 [#allocation3], 4
    %s52 = int_to_ptr.vmem [resolvable:$true] %s51
    %54 = dma.hbm_to_vmem [thread:$0]  %s4, 8192, %s52, [#allocation5]
    %s55 = scalar_lea.sflag [#allocation5], 1
    // Predicated region
    $region38: #{tpu_custom_call.1} parent=1 // pred_check
      _
    $region39: #{tpu_custom_call.1} parent=1 // pred_check_branch
      %57 = sbr.rel target = $region41
    $region40: #{tpu_custom_call.1} parent=1 // pred_region
      %58 = sst [smem:[#allocation11]] [#allocation14]
      %59 = sst [smem:[#allocation12]] [#allocation13]
    $region41: #{tpu_custom_call.1} parent=1 // pred_fallthru
      _
    %61 = shalt.err (0)
    %s63 = sshll.u32 [#allocation4], 4
    %s64 = int_to_ptr.vmem [resolvable:$true] %s63
    %66 = dma.hbm_to_vmem [thread:$0]  %s5, 8192, %s64, %s55
    %v67 = vld [vmem:[%s0] sm:$0xff]
    %v68 = vld [vmem:[%s0 + $0x8] sm:$0xff]
    %v69 = vld [vmem:[%s0 + $0x10] sm:$0xff]
    %v70 = vld [vmem:[%s0 + $0x18] sm:$0xff]
    %v71 = vld [vmem:[%s0 + $0x20] sm:$0xff]
    %v72 = vld [vmem:[%s0 + $0x28] sm:$0xff]
    %v73 = vld [vmem:[%s0 + $0x30] sm:$0xff]
    %v74 = vld [vmem:[%s0 + $0x38] sm:$0xff]
    %v75 = vld [vmem:[%s1] sm:$0xff]
    %v76 = vld [vmem:[%s1 + $0x8] sm:$0xff]
    %v77 = vld [vmem:[%s1 + $0x10] sm:$0xff]
    %v78 = vld [vmem:[%s1 + $0x18] sm:$0xff]
    %v79 = vld [vmem:[%s3] sm:$0xf]
    %v81 = vlaneseq
    %v82 = vshrl.u32 %v81, 7
    %v83 = vsub.s32 0, %v82
    %v84 = vrot.slane %v79, %v83
    %v85 = vlaneseq
    %v86 = vshrl.u32 %v85, 7
    %v87 = vsub.s32 1, %v86
    %v88 = vrot.slane %v79, %v87
    %v89 = vlaneseq
    %v90 = vshrl.u32 %v89, 7
    %v91 = vsub.s32 2, %v90
    %v92 = vrot.slane %v79, %v91
    %v93 = vlaneseq
    %v94 = vshrl.u32 %v93, 7
    %v95 = vsub.s32 3, %v94
    %v96 = vrot.slane %v79, %v95
    %vm101 = vcmask 64512
    %v103 = vsel %vm101, %v67, 0
    %v106 = vsel %vm101, %v68, 0
    %v109 = vsel %vm101, %v69, 0
    %v112 = vsel %vm101, %v70, 0
    %v115 = vsel %vm101, %v71, 0
    %v118 = vsel %vm101, %v72, 0
    %v121 = vsel %vm101, %v73, 0
    %v124 = vsel %vm101, %v74, 0
    %126 = vmatprep.subr.mxu0 %v76
    %127 = vmatpush1.msra.mxu0 %v75
    %128 = vmatprep.subr.mxu0 0.0
    %129 = vmatpush1.msra.mxu0 0.0
    %130 = vmatprep.subr.mxu0 0.0
    %131 = vmatpush1.msra.mxu0 0.0
    %132 = vmatprep.subr.mxu0 0.0
    %133 = vmatpush1.msra.mxu0 0.0
    %134 = vmatprep.subr.mxu0 0.0
    %135 = vmatpush1.msra.mxu0 0.0
    %136 = vmatprep.subr.mxu0 0.0
    %137 = vmatpush1.msra.mxu0 0.0
    %138 = vmatprep.subr.mxu0 0.0
    %139 = vmatpush1.msra.mxu0 0.0
    %140 = vmatprep.subr.mxu0 0.0
    %141 = vmatpush1.msra.mxu0 0.0
    %142 = vmatprep.subr.mxu0 0.0
    %143 = vmatpush1.msra.mxu0 0.0
    %144 = vmatprep.subr.mxu0 0.0
    %145 = vmatpush1.msra.mxu0 0.0
    %146 = vmatprep.subr.mxu0 0.0
    %147 = vmatpush1.msra.mxu0 0.0
    %148 = vmatprep.subr.mxu0 0.0
    %149 = vmatpush1.msra.mxu0 0.0
    %150 = vmatprep.subr.mxu0 0.0
    %151 = vmatpush1.msra.mxu0 0.0
    %152 = vmatprep.subr.mxu0 0.0
    %153 = vmatpush1.msra.mxu0 0.0
    %154 = vmatprep.subr.mxu0 0.0
    %155 = vmatpush1.msra.mxu0 0.0
    %156 = vmatprep.subr.mxu0 0.0
    %157 = vmatpush1.msra.mxu0 0.0
    %158 = vmatprep.subr.mxu0 0.0
    %159 = vmatpush1.msra.mxu0 0.0
    %160 = vmatprep.subr.mxu0 0.0
    %161 = vmatpush1.msra.mxu0 0.0
    %162 = vmatprep.subr.mxu0 0.0
    %163 = vmatpush1.msra.mxu0 0.0
    %164 = vmatprep.subr.mxu0 0.0
    %165 = vmatpush1.msra.mxu0 0.0
    %166 = vmatprep.subr.mxu0 0.0
    %167 = vmatpush1.msra.mxu0 0.0
    %168 = vmatprep.subr.mxu0 0.0
    %169 = vmatpush1.msra.mxu0 0.0
    %170 = vmatprep.subr.mxu0 0.0
    %171 = vmatpush1.msra.mxu0 0.0
    %172 = vmatprep.subr.mxu0 0.0
    %173 = vmatpush1.msra.mxu0 0.0
    %174 = vmatprep.subr.mxu0 0.0
    %175 = vmatpush1.msra.mxu0 0.0
    %176 = vmatprep.subr.mxu0 0.0
    %177 = vmatpush1.msra.mxu0 0.0
    %178 = vmatprep.subr.mxu0 0.0
    %179 = vmatpush1.msra.mxu0 0.0
    %180 = vmatprep.subr.mxu0 0.0
    %181 = vmatpush1.msra.mxu0 0.0
    %182 = vmatprep.subr.mxu0 0.0
    %183 = vmatpush1.msra.mxu0 0.0
    %184 = vmatprep.subr.mxu0 0.0
    %185 = vmatpush1.msra.mxu0 0.0
    %186 = vmatprep.subr.mxu0 0.0
    %187 = vmatpush1.msra.mxu0 0.0
    %188 = vmatprep.subr.mxu0 0.0
    %189 = vmatpush1.msra.mxu0 0.0
    %190 = vmatprep.mubr.f32.mxu0 0.0
    %191 = vmatmul.mubr.f32.gmra.mrb[0].mxu0 %v103
    %v192 = vpop.f32.mrb[0].mxu0
    %v193 = vadd.f32 %v84, %v192
    %v194 = vpop.f32.mrb[0].mxu0
    %v195 = vadd.f32 %v88, %v194
    %196 = vmatprep.mubr.f32.mxu0 0.0
    %197 = vmatmul.mubr.f32.gmra.mrb[0].mxu0 %v106
    %v198 = vpop.f32.mrb[0].mxu0
    %v199 = vadd.f32 %v84, %v198
    %v200 = vpop.f32.mrb[0].mxu0
    %v201 = vadd.f32 %v88, %v200
    %202 = vmatprep.mubr.f32.mxu0 0.0
    %203 = vmatmul.mubr.f32.gmra.mrb[0].mxu0 %v109
    %v204 = vpop.f32.mrb[0].mxu0
    %v205 = vadd.f32 %v84, %v204
    %v206 = vpop.f32.mrb[0].mxu0
    %v207 = vadd.f32 %v88, %v206
    %208 = vmatprep.mubr.f32.mxu0 0.0
    %209 = vmatmul.mubr.f32.gmra.mrb[0].mxu0 %v112
    %v210 = vpop.f32.mrb[0].mxu0
    %v211 = vadd.f32 %v84, %v210
    %v212 = vpop.f32.mrb[0].mxu0
    %v213 = vadd.f32 %v88, %v212
    %214 = vmatprep.mubr.f32.mxu0 0.0
    %215 = vmatmul.mubr.f32.gmra.mrb[0].mxu0 %v115
    %v216 = vpop.f32.mrb[0].mxu0
    %v217 = vadd.f32 %v84, %v216
    %v218 = vpop.f32.mrb[0].mxu0
    %v219 = vadd.f32 %v88, %v218
    %220 = vmatprep.mubr.f32.mxu0 0.0
    %221 = vmatmul.mubr.f32.gmra.mrb[0].mxu0 %v118
    %v222 = vpop.f32.mrb[0].mxu0
    %v223 = vadd.f32 %v84, %v222
    %v224 = vpop.f32.mrb[0].mxu0
    %v225 = vadd.f32 %v88, %v224
    %226 = vmatprep.mubr.f32.mxu0 0.0
    %227 = vmatmul.mubr.f32.gmra.mrb[0].mxu0 %v121
    %v228 = vpop.f32.mrb[0].mxu0
    %v229 = vadd.f32 %v84, %v228
    %v230 = vpop.f32.mrb[0].mxu0
    %v231 = vadd.f32 %v88, %v230
    %232 = vmatprep.mubr.f32.mxu0 0.0
    %233 = vmatmul.mubr.f32.gmra.mrb[0].mxu0 %v124
    %v234 = vpop.f32.mrb[0].mxu0
    %v235 = vadd.f32 %v84, %v234
    %v236 = vpop.f32.mrb[0].mxu0
    %v237 = vadd.f32 %v88, %v236
    %238 = vdwg.mxu0
    %239 = vmatprep.subr.mxu0 %v78
    %240 = vmatpush1.msra.mxu0 %v77
    %241 = vmatprep.subr.mxu0 0.0
    %242 = vmatpush1.msra.mxu0 0.0
    %243 = vmatprep.subr.mxu0 0.0
    %244 = vmatpush1.msra.mxu0 0.0
    %245 = vmatprep.subr.mxu0 0.0
    %246 = vmatpush1.msra.mxu0 0.0
    %247 = vmatprep.subr.mxu0 0.0
    %248 = vmatpush1.msra.mxu0 0.0
    %249 = vmatprep.subr.mxu0 0.0
    %250 = vmatpush1.msra.mxu0 0.0
    %251 = vmatprep.subr.mxu0 0.0
    %252 = vmatpush1.msra.mxu0 0.0
    %253 = vmatprep.subr.mxu0 0.0
    %254 = vmatpush1.msra.mxu0 0.0
    %255 = vmatprep.subr.mxu0 0.0
    %256 = vmatpush1.msra.mxu0 0.0
    %257 = vmatprep.subr.mxu0 0.0
    %258 = vmatpush1.msra.mxu0 0.0
    %259 = vmatprep.subr.mxu0 0.0
    %260 = vmatpush1.msra.mxu0 0.0
    %261 = vmatprep.subr.mxu0 0.0
    %262 = vmatpush1.msra.mxu0 0.0
    %263 = vmatprep.subr.mxu0 0.0
    %264 = vmatpush1.msra.mxu0 0.0
    %265 = vmatprep.subr.mxu0 0.0
    %266 = vmatpush1.msra.mxu0 0.0
    %267 = vmatprep.subr.mxu0 0.0
    %268 = vmatpush1.msra.mxu0 0.0
    %269 = vmatprep.subr.mxu0 0.0
    %270 = vmatpush1.msra.mxu0 0.0
    %271 = vmatprep.subr.mxu0 0.0
    %272 = vmatpush1.msra.mxu0 0.0
    %273 = vmatprep.subr.mxu0 0.0
    %274 = vmatpush1.msra.mxu0 0.0
    %275 = vmatprep.subr.mxu0 0.0
    %276 = vmatpush1.msra.mxu0 0.0
    %277 = vmatprep.subr.mxu0 0.0
    %278 = vmatpush1.msra.mxu0 0.0
    %279 = vmatprep.subr.mxu0 0.0
    %280 = vmatpush1.msra.mxu0 0.0
    %281 = vmatprep.subr.mxu0 0.0
    %282 = vmatpush1.msra.mxu0 0.0
    %283 = vmatprep.subr.mxu0 0.0
    %284 = vmatpush1.msra.mxu0 0.0
    %285 = vmatprep.subr.mxu0 0.0
    %286 = vmatpush1.msra.mxu0 0.0
    %287 = vmatprep.subr.mxu0 0.0
    %288 = vmatpush1.msra.mxu0 0.0
    %289 = vmatprep.subr.mxu0 0.0
    %290 = vmatpush1.msra.mxu0 0.0
    %291 = vmatprep.subr.mxu0 0.0
    %292 = vmatpush1.msra.mxu0 0.0
    %293 = vmatprep.subr.mxu0 0.0
    %294 = vmatpush1.msra.mxu0 0.0
    %295 = vmatprep.subr.mxu0 0.0
    %296 = vmatpush1.msra.mxu0 0.0
    %297 = vmatprep.subr.mxu0 0.0
    %298 = vmatpush1.msra.mxu0 0.0
    %299 = vmatprep.subr.mxu0 0.0
    %300 = vmatpush1.msra.mxu0 0.0
    %301 = vmatprep.subr.mxu0 0.0
    %302 = vmatpush1.msra.mxu0 0.0
    %303 = vmatprep.mubr.f32.mxu0 0.0
    %304 = vmatmul.mubr.f32.gmra.mrb[0].mxu0 %v103
    %v305 = vpop.f32.mrb[0].mxu0
    %v306 = vadd.f32 %v92, %v305
    %v307 = vpop.f32.mrb[0].mxu0
    %v308 = vadd.f32 %v96, %v307
    %309 = vmatprep.mubr.f32.mxu0 0.0
    %310 = vmatmul.mubr.f32.gmra.mrb[0].mxu0 %v106
    %v311 = vpop.f32.mrb[0].mxu0
    %v312 = vadd.f32 %v92, %v311
    %v313 = vpop.f32.mrb[0].mxu0
    %v314 = vadd.f32 %v96, %v313
    %315 = vmatprep.mubr.f32.mxu0 0.0
    %316 = vmatmul.mubr.f32.gmra.mrb[0].mxu0 %v109
    %v317 = vpop.f32.mrb[0].mxu0
    %v318 = vadd.f32 %v92, %v317
    %v319 = vpop.f32.mrb[0].mxu0
    %v320 = vadd.f32 %v96, %v319
    %321 = vmatprep.mubr.f32.mxu0 0.0
    %322 = vmatmul.mubr.f32.gmra.mrb[0].mxu0 %v112
    %v323 = vpop.f32.mrb[0].mxu0
    %v324 = vadd.f32 %v92, %v323
    %v325 = vpop.f32.mrb[0].mxu0
    %v326 = vadd.f32 %v96, %v325
    %327 = vmatprep.mubr.f32.mxu0 0.0
    %328 = vmatmul.mubr.f32.gmra.mrb[0].mxu0 %v115
    %v329 = vpop.f32.mrb[0].mxu0
    %v330 = vadd.f32 %v92, %v329
    %v331 = vpop.f32.mrb[0].mxu0
    %v332 = vadd.f32 %v96, %v331
    %333 = vmatprep.mubr.f32.mxu0 0.0
    %334 = vmatmul.mubr.f32.gmra.mrb[0].mxu0 %v118
    %v335 = vpop.f32.mrb[0].mxu0
    %v336 = vadd.f32 %v92, %v335
    %v337 = vpop.f32.mrb[0].mxu0
    %v338 = vadd.f32 %v96, %v337
    %339 = vmatprep.mubr.f32.mxu0 0.0
    %340 = vmatmul.mubr.f32.gmra.mrb[0].mxu0 %v121
    %v341 = vpop.f32.mrb[0].mxu0
    %v342 = vadd.f32 %v92, %v341
    %v343 = vpop.f32.mrb[0].mxu0
    %v344 = vadd.f32 %v96, %v343
    %345 = vmatprep.mubr.f32.mxu0 0.0
    %346 = vmatmul.mubr.f32.gmra.mrb[0].mxu0 %v124
    %v347 = vpop.f32.mrb[0].mxu0
    %v348 = vadd.f32 %v92, %v347
    %v349 = vpop.f32.mrb[0].mxu0
    %v350 = vadd.f32 %v96, %v349
    %351 = vdwg.mxu0
    %352 = vst [vmem:[#allocation2] sm:$0xff] %v193
    %353 = vst [vmem:[#allocation2 + $0x8] sm:$0xff] %v195
    %354 = vst [vmem:[#allocation2 + $0x10] sm:$0xff] %v306
    %355 = vst [vmem:[#allocation2 + $0x18] sm:$0xff] %v308
    %356 = vst [vmem:[#allocation2 + $0x20] sm:$0xff] %v199
    %357 = vst [vmem:[#allocation2 + $0x28] sm:$0xff] %v201
    %358 = vst [vmem:[#allocation2 + $0x30] sm:$0xff] %v312
    %359 = vst [vmem:[#allocation2 + $0x38] sm:$0xff] %v314
    %360 = vst [vmem:[#allocation2 + $0x40] sm:$0xff] %v205
    %361 = vst [vmem:[#allocation2 + $0x48] sm:$0xff] %v207
    %362 = vst [vmem:[#allocation2 + $0x50] sm:$0xff] %v318
    %363 = vst [vmem:[#allocation2 + $0x58] sm:$0xff] %v320
    %364 = vst [vmem:[#allocation2 + $0x60] sm:$0xff] %v211
    %365 = vst [vmem:[#allocation2 + $0x68] sm:$0xff] %v213
    %366 = vst [vmem:[#allocation2 + $0x70] sm:$0xff] %v324
    %367 = vst [vmem:[#allocation2 + $0x78] sm:$0xff] %v326
    %368 = vst [vmem:[#allocation2 + $0x80] sm:$0xff] %v217
    %369 = vst [vmem:[#allocation2 + $0x88] sm:$0xff] %v219
    %370 = vst [vmem:[#allocation2 + $0x90] sm:$0xff] %v330
    %371 = vst [vmem:[#allocation2 + $0x98] sm:$0xff] %v332
    %372 = vst [vmem:[#allocation2 + $0xa0] sm:$0xff] %v223
    %373 = vst [vmem:[#allocation2 + $0xa8] sm:$0xff] %v225
    %374 = vst [vmem:[#allocation2 + $0xb0] sm:$0xff] %v336
    %375 = vst [vmem:[#allocation2 + $0xb8] sm:$0xff] %v338
    %376 = vst [vmem:[#allocation2 + $0xc0] sm:$0xff] %v229
    %377 = vst [vmem:[#allocation2 + $0xc8] sm:$0xff] %v231
    %378 = vst [vmem:[#allocation2 + $0xd0] sm:$0xff] %v342
    %379 = vst [vmem:[#allocation2 + $0xd8] sm:$0xff] %v344
    %380 = vst [vmem:[#allocation2 + $0xe0] sm:$0xff] %v235
    %381 = vst [vmem:[#allocation2 + $0xe8] sm:$0xff] %v237
    %382 = vst [vmem:[#allocation2 + $0xf0] sm:$0xff] %v348
    %383 = vst [vmem:[#allocation2 + $0xf8] sm:$0xff] %v350
    %v384 = vld [vmem:[#allocation7] sm:$0xff]
    %v385 = vld [vmem:[#allocation7 + $0x8] sm:$0xff]
    %v386 = vld [vmem:[#allocation7 + $0x10] sm:$0xff]
    %v387 = vld [vmem:[#allocation7 + $0x18] sm:$0xff]
    %v388 = vld [vmem:[#allocation7 + $0x20] sm:$0xff]
    %v389 = vld [vmem:[#allocation7 + $0x28] sm:$0xff]
    %v390 = vld [vmem:[#allocation7 + $0x30] sm:$0xff]
    %v391 = vld [vmem:[#allocation7 + $0x38] sm:$0xff]
    %v392 = vld [vmem:[#allocation7 + $0x40] sm:$0xff]
    %v393 = vld [vmem:[#allocation7 + $0x48] sm:$0xff]
    %v394 = vld [vmem:[#allocation7 + $0x50] sm:$0xff]
    %v395 = vld [vmem:[#allocation7 + $0x58] sm:$0xff]
    %v396 = vld [vmem:[#allocation7 + $0x60] sm:$0xff]
    %v397 = vld [vmem:[#allocation7 + $0x68] sm:$0xff]
    %v398 = vld [vmem:[#allocation7 + $0x70] sm:$0xff]
    %v399 = vld [vmem:[#allocation7 + $0x78] sm:$0xff]
    %v400 = vld [vmem:[#allocation7 + $0x80] sm:$0xff]
    %v401 = vld [vmem:[#allocation7 + $0x88] sm:$0xff]
    %v402 = vld [vmem:[#allocation7 + $0x90] sm:$0xff]
    %v403 = vld [vmem:[#allocation7 + $0x98] sm:$0xff]
    %v404 = vld [vmem:[#allocation7 + $0xa0] sm:$0xff]
    %v405 = vld [vmem:[#allocation7 + $0xa8] sm:$0xff]
    %v406 = vld [vmem:[#allocation7 + $0xb0] sm:$0xff]
    %v407 = vld [vmem:[#allocation7 + $0xb8] sm:$0xff]
    %v408 = vld [vmem:[#allocation7 + $0xc0] sm:$0xff]
    %v409 = vld [vmem:[#allocation7 + $0xc8] sm:$0xff]
    %v410 = vld [vmem:[#allocation7 + $0xd0] sm:$0xff]
    %v411 = vld [vmem:[#allocation7 + $0xd8] sm:$0xff]
    %v412 = vld [vmem:[#allocation7 + $0xe0] sm:$0xff]
    %v413 = vld [vmem:[#allocation7 + $0xe8] sm:$0xff]
    %v414 = vld [vmem:[#allocation7 + $0xf0] sm:$0xff]
    %v415 = vld [vmem:[#allocation7 + $0xf8] sm:$0xff]
    %v416 = vld [vmem:[#allocation7 + $0x100] sm:$0xff]
    %v417 = vld [vmem:[#allocation7 + $0x108] sm:$0xff]
    %v418 = vld [vmem:[#allocation7 + $0x110] sm:$0xff]
    %v419 = vld [vmem:[#allocation7 + $0x118] sm:$0xff]
    %v420 = vld [vmem:[#allocation7 + $0x120] sm:$0xff]
    %v421 = vld [vmem:[#allocation7 + $0x128] sm:$0xff]
    %v422 = vld [vmem:[#allocation7 + $0x130] sm:$0xff]
    %v423 = vld [vmem:[#allocation7 + $0x138] sm:$0xff]
    %v424 = vld [vmem:[#allocation7 + $0x140] sm:$0xff]
    %v425 = vld [vmem:[#allocation7 + $0x148] sm:$0xff]
    %v426 = vld [vmem:[#allocation7 + $0x150] sm:$0xff]
    %v427 = vld [vmem:[#allocation7 + $0x158] sm:$0xff]
    %v428 = vld [vmem:[#allocation7 + $0x160] sm:$0xff]
    %v429 = vld [vmem:[#allocation7 + $0x168] sm:$0xff]
    %v430 = vld [vmem:[#allocation7 + $0x170] sm:$0xff]
    %v431 = vld [vmem:[#allocation7 + $0x178] sm:$0xff]
    %v432 = vld [vmem:[#allocation7 + $0x180] sm:$0xff]
    %v433 = vld [vmem:[#allocation7 + $0x188] sm:$0xff]
    %v434 = vld [vmem:[#allocation7 + $0x190] sm:$0xff]
    %v435 = vld [vmem:[#allocation7 + $0x198] sm:$0xff]
    %v436 = vld [vmem:[#allocation7 + $0x1a0] sm:$0xff]
    %v437 = vld [vmem:[#allocation7 + $0x1a8] sm:$0xff]
    %v438 = vld [vmem:[#allocation7 + $0x1b0] sm:$0xff]
    %v439 = vld [vmem:[#allocation7 + $0x1b8] sm:$0xff]
    %v440 = vld [vmem:[#allocation7 + $0x1c0] sm:$0xff]
    %v441 = vld [vmem:[#allocation7 + $0x1c8] sm:$0xff]
    %v442 = vld [vmem:[#allocation7 + $0x1d0] sm:$0xff]
    %v443 = vld [vmem:[#allocation7 + $0x1d8] sm:$0xff]
    %v444 = vld [vmem:[#allocation7 + $0x1e0] sm:$0xff]
    %v445 = vld [vmem:[#allocation7 + $0x1e8] sm:$0xff]
    %v446 = vld [vmem:[#allocation7 + $0x1f0] sm:$0xff]
    %v447 = vld [vmem:[#allocation7 + $0x1f8] sm:$0xff]
    %v448 = vld [vmem:[#allocation2] sm:$0xff]
    %v449 = vld [vmem:[#allocation2 + $0x8] sm:$0xff]
    %v450 = vld [vmem:[#allocation2 + $0x10] sm:$0xff]
    %v451 = vld [vmem:[#allocation2 + $0x18] sm:$0xff]
    %v452 = vxor.u32 %v448, 2147483648
    %v453 = vmul.f32 %v452, 1.442695
    %v454 = vpow.pop %v453
    %v455 = vadd.f32 %v454, 1.0
    %v456 = vrcp.pop %v455
    %v457 = vmul.f32 1.0, %v456
    %v458 = vxor.u32 %v449, 2147483648
    %v459 = vmul.f32 %v458, 1.442695
    %v460 = vpow.pop %v459
    %v461 = vadd.f32 %v460, 1.0
    %v462 = vrcp.pop %v461
    %v463 = vmul.f32 1.0, %v462
    %v464 = vtanh.pop %v450
    %v465 = vxor.u32 %v451, 2147483648
    %v466 = vmul.f32 %v465, 1.442695
    %v467 = vpow.pop %v466
    %v468 = vadd.f32 %v467, 1.0
    %v469 = vrcp.pop %v468
    %v470 = vmul.f32 1.0, %v469
    %v471 = vmul.f32 %v463, 0.0
    %v472 = vmul.f32 %v457, %v464
    %v473 = vadd.f32 %v471, %v472
    %v474 = vtanh.pop %v473
    %v475 = vmul.f32 %v470, %v474
    %v476 = vld [vmem:[#allocation2 + $0x20] sm:$0xff]
    %v477 = vld [vmem:[#allocation2 + $0x28] sm:$0xff]
    %v478 = vld [vmem:[#allocation2 + $0x30] sm:$0xff]
    %v479 = vld [vmem:[#allocation2 + $0x38] sm:$0xff]
    %480 = vmatprep.subr.mxu0 %v385
    %481 = vmatpush1.msra.mxu0 %v384
    %482 = vmatprep.subr.mxu0 %v389
    %483 = vmatpush1.msra.mxu0 %v388
    %484 = vmatprep.subr.mxu0 %v393
    %485 = vmatpush1.msra.mxu0 %v392
    %486 = vmatprep.subr.mxu0 %v397
    %487 = vmatpush1.msra.mxu0 %v396
    %488 = vmatprep.subr.mxu0 %v401
    %489 = vmatpush1.msra.mxu0 %v400
    %490 = vmatprep.subr.mxu0 %v405
    %491 = vmatpush1.msra.mxu0 %v404
    %492 = vmatprep.subr.mxu0 %v409
    %493 = vmatpush1.msra.mxu0 %v408
    %494 = vmatprep.subr.mxu0 %v413
    %495 = vmatpush1.msra.mxu0 %v412
    %496 = vmatprep.subr.mxu0 %v417
    %497 = vmatpush1.msra.mxu0 %v416
    %498 = vmatprep.subr.mxu0 %v421
    %499 = vmatpush1.msra.mxu0 %v420
    %500 = vmatprep.subr.mxu0 %v425
    %501 = vmatpush1.msra.mxu0 %v424
    %502 = vmatprep.subr.mxu0 %v429
    %503 = vmatpush1.msra.mxu0 %v428
    %504 = vmatprep.subr.mxu0 %v433
    %505 = vmatpush1.msra.mxu0 %v432
    %506 = vmatprep.subr.mxu0 %v437
    %507 = vmatpush1.msra.mxu0 %v436
    %508 = vmatprep.subr.mxu0 %v441
    %509 = vmatpush1.msra.mxu0 %v440
    %510 = vmatprep.subr.mxu0 %v445
    %511 = vmatpush1.msra.mxu0 %v444
    %512 = vmatprep.subr.mxu0 0.0
    %513 = vmatpush1.msra.mxu0 0.0
    %514 = vmatprep.subr.mxu0 0.0
    %515 = vmatpush1.msra.mxu0 0.0
    %516 = vmatprep.subr.mxu0 0.0
    %517 = vmatpush1.msra.mxu0 0.0
    %518 = vmatprep.subr.mxu0 0.0
    %519 = vmatpush1.msra.mxu0 0.0
    %520 = vmatprep.subr.mxu0 0.0
    %521 = vmatpush1.msra.mxu0 0.0
    %522 = vmatprep.subr.mxu0 0.0
    %523 = vmatpush1.msra.mxu0 0.0
    %524 = vmatprep.subr.mxu0 0.0
    %525 = vmatpush1.msra.mxu0 0.0
    %526 = vmatprep.subr.mxu0 0.0
    %527 = vmatpush1.msra.mxu0 0.0
    %528 = vmatprep.subr.mxu0 0.0
    %529 = vmatpush1.msra.mxu0 0.0
    %530 = vmatprep.subr.mxu0 0.0
    %531 = vmatpush1.msra.mxu0 0.0
    %532 = vmatprep.subr.mxu0 0.0
    %533 = vmatpush1.msra.mxu0 0.0
    %534 = vmatprep.subr.mxu0 0.0
    %535 = vmatpush1.msra.mxu0 0.0
    %536 = vmatprep.subr.mxu0 0.0
    %537 = vmatpush1.msra.mxu0 0.0
    %538 = vmatprep.subr.mxu0 0.0
    %539 = vmatpush1.msra.mxu0 0.0
    %540 = vmatprep.subr.mxu0 0.0
    %541 = vmatpush1.msra.mxu0 0.0
    %542 = vmatprep.subr.mxu0 0.0
    %543 = vmatpush1.msra.mxu0 0.0
    %544 = vmatprep.mubr.f32.mxu0 0.0
    %545 = vmatmul.mubr.f32.gmra.mrb[0].mxu0 %v475
    %v546 = vpop.f32.mrb[0].mxu0
    %v547 = vadd.f32 0.0, %v546
    %v548 = vpop.f32.mrb[0].mxu0
    %v549 = vadd.f32 0.0, %v548
    %550 = vdwg.mxu0
    %551 = vmatprep.subr.mxu0 %v387
    %552 = vmatpush1.msra.mxu0 %v386
    %553 = vmatprep.subr.mxu0 %v391
    %554 = vmatpush1.msra.mxu0 %v390
    %555 = vmatprep.subr.mxu0 %v395
    %556 = vmatpush1.msra.mxu0 %v394
    %557 = vmatprep.subr.mxu0 %v399
    %558 = vmatpush1.msra.mxu0 %v398
    %559 = vmatprep.subr.mxu0 %v403
    %560 = vmatpush1.msra.mxu0 %v402
    %561 = vmatprep.subr.mxu0 %v407
    %562 = vmatpush1.msra.mxu0 %v406
    %563 = vmatprep.subr.mxu0 %v411
    %564 = vmatpush1.msra.mxu0 %v410
    %565 = vmatprep.subr.mxu0 %v415
    %566 = vmatpush1.msra.mxu0 %v414
    %567 = vmatprep.subr.mxu0 %v419
    %568 = vmatpush1.msra.mxu0 %v418
    %569 = vmatprep.subr.mxu0 %v423
    %570 = vmatpush1.msra.mxu0 %v422
    %571 = vmatprep.subr.mxu0 %v427
    %572 = vmatpush1.msra.mxu0 %v426
    %573 = vmatprep.subr.mxu0 %v431
    %574 = vmatpush1.msra.mxu0 %v430
    %575 = vmatprep.subr.mxu0 %v435
    %576 = vmatpush1.msra.mxu0 %v434
    %577 = vmatprep.subr.mxu0 %v439
    %578 = vmatpush1.msra.mxu0 %v438
    %579 = vmatprep.subr.mxu0 %v443
    %580 = vmatpush1.msra.mxu0 %v442
    %581 = vmatprep.subr.mxu0 %v447
    %582 = vmatpush1.msra.mxu0 %v446
    %583 = vmatprep.subr.mxu0 0.0
    %584 = vmatpush1.msra.mxu0 0.0
    %585 = vmatprep.subr.mxu0 0.0
    %586 = vmatpush1.msra.mxu0 0.0
    %587 = vmatprep.subr.mxu0 0.0
    %588 = vmatpush1.msra.mxu0 0.0
    %589 = vmatprep.subr.mxu0 0.0
    %590 = vmatpush1.msra.mxu0 0.0
    %591 = vmatprep.subr.mxu0 0.0
    %592 = vmatpush1.msra.mxu0 0.0
    %593 = vmatprep.subr.mxu0 0.0
    %594 = vmatpush1.msra.mxu0 0.0
    %595 = vmatprep.subr.mxu0 0.0
    %596 = vmatpush1.msra.mxu0 0.0
    %597 = vmatprep.subr.mxu0 0.0
    %598 = vmatpush1.msra.mxu0 0.0
    %599 = vmatprep.subr.mxu0 0.0
    %600 = vmatpush1.msra.mxu0 0.0
    %601 = vmatprep.subr.mxu0 0.0
    %602 = vmatpush1.msra.mxu0 0.0
    %603 = vmatprep.subr.mxu0 0.0
    %604 = vmatpush1.msra.mxu0 0.0
    %605 = vmatprep.subr.mxu0 0.0
    %606 = vmatpush1.msra.mxu0 0.0
    %607 = vmatprep.subr.mxu0 0.0
    %608 = vmatpush1.msra.mxu0 0.0
    %609 = vmatprep.subr.mxu0 0.0
    %610 = vmatpush1.msra.mxu0 0.0
    %611 = vmatprep.subr.mxu0 0.0
    %612 = vmatpush1.msra.mxu0 0.0
    %613 = vmatprep.subr.mxu0 0.0
    %614 = vmatpush1.msra.mxu0 0.0
    %615 = vmatprep.mubr.f32.mxu0 0.0
    %616 = vmatmul.mubr.f32.gmra.mrb[0].mxu0 %v475
    %v617 = vpop.f32.mrb[0].mxu0
    %v618 = vadd.f32 0.0, %v617
    %v619 = vpop.f32.mrb[0].mxu0
    %v620 = vadd.f32 0.0, %v619
    %621 = vdwg.mxu0
    %v622 = vadd.f32 %v476, %v547
    %v623 = vadd.f32 %v477, %v549
    %v624 = vadd.f32 %v478, %v618
    %v625 = vadd.f32 %v479, %v620
    %v626 = vxor.u32 %v622, 2147483648
    %v627 = vmul.f32 %v626, 1.442695
    %v628 = vpow.pop %v627
    %v629 = vadd.f32 %v628, 1.0
    %v630 = vrcp.pop %v629
    %v631 = vmul.f32 1.0, %v630
    %v632 = vxor.u32 %v623, 2147483648
    %v633 = vmul.f32 %v632, 1.442695
    %v634 = vpow.pop %v633
    %v635 = vadd.f32 %v634, 1.0
    %v636 = vrcp.pop %v635
    %v637 = vmul.f32 1.0, %v636
    %v638 = vtanh.pop %v624
    %v639 = vxor.u32 %v625, 2147483648
    %v640 = vmul.f32 %v639, 1.442695
    %v641 = vpow.pop %v640
    %v642 = vadd.f32 %v641, 1.0
    %v643 = vrcp.pop %v642
    %v644 = vmul.f32 1.0, %v643
    %v645 = vmul.f32 %v637, %v473
    %v646 = vmul.f32 %v631, %v638
    %v647 = vadd.f32 %v645, %v646
    %v648 = vtanh.pop %v647
    %v649 = vmul.f32 %v644, %v648
    %v650 = vld [vmem:[#allocation2 + $0x40] sm:$0xff]
    %v651 = vld [vmem:[#allocation2 + $0x48] sm:$0xff]
    %v652 = vld [vmem:[#allocation2 + $0x50] sm:$0xff]
    %v653 = vld [vmem:[#allocation2 + $0x58] sm:$0xff]
    %654 = vmatprep.subr.mxu0 %v385
    %655 = vmatpush1.msra.mxu0 %v384
    %656 = vmatprep.subr.mxu0 %v389
    %657 = vmatpush1.msra.mxu0 %v388
    %658 = vmatprep.subr.mxu0 %v393
    %659 = vmatpush1.msra.mxu0 %v392
    %660 = vmatprep.subr.mxu0 %v397
    %661 = vmatpush1.msra.mxu0 %v396
    %662 = vmatprep.subr.mxu0 %v401
    %663 = vmatpush1.msra.mxu0 %v400
    %664 = vmatprep.subr.mxu0 %v405
    %665 = vmatpush1.msra.mxu0 %v404
    %666 = vmatprep.subr.mxu0 %v409
    %667 = vmatpush1.msra.mxu0 %v408
    %668 = vmatprep.subr.mxu0 %v413
    %669 = vmatpush1.msra.mxu0 %v412
    %670 = vmatprep.subr.mxu0 %v417
    %671 = vmatpush1.msra.mxu0 %v416
    %672 = vmatprep.subr.mxu0 %v421
    %673 = vmatpush1.msra.mxu0 %v420
    %674 = vmatprep.subr.mxu0 %v425
    %675 = vmatpush1.msra.mxu0 %v424
    %676 = vmatprep.subr.mxu0 %v429
    %677 = vmatpush1.msra.mxu0 %v428
    %678 = vmatprep.subr.mxu0 %v433
    %679 = vmatpush1.msra.mxu0 %v432
    %680 = vmatprep.subr.mxu0 %v437
    %681 = vmatpush1.msra.mxu0 %v436
    %682 = vmatprep.subr.mxu0 %v441
    %683 = vmatpush1.msra.mxu0 %v440
    %684 = vmatprep.subr.mxu0 %v445
    %685 = vmatpush1.msra.mxu0 %v444
    %686 = vmatprep.subr.mxu0 0.0
    %687 = vmatpush1.msra.mxu0 0.0
    %688 = vmatprep.subr.mxu0 0.0
    %689 = vmatpush1.msra.mxu0 0.0
    %690 = vmatprep.subr.mxu0 0.0
    %691 = vmatpush1.msra.mxu0 0.0
    %692 = vmatprep.subr.mxu0 0.0
    %693 = vmatpush1.msra.mxu0 0.0
    %694 = vmatprep.subr.mxu0 0.0
    %695 = vmatpush1.msra.mxu0 0.0
    %696 = vmatprep.subr.mxu0 0.0
    %697 = vmatpush1.msra.mxu0 0.0
    %698 = vmatprep.subr.mxu0 0.0
    %699 = vmatpush1.msra.mxu0 0.0
    %700 = vmatprep.subr.mxu0 0.0
    %701 = vmatpush1.msra.mxu0 0.0
    %702 = vmatprep.subr.mxu0 0.0
    %703 = vmatpush1.msra.mxu0 0.0
    %704 = vmatprep.subr.mxu0 0.0
    %705 = vmatpush1.msra.mxu0 0.0
    %706 = vmatprep.subr.mxu0 0.0
    %707 = vmatpush1.msra.mxu0 0.0
    %708 = vmatprep.subr.mxu0 0.0
    %709 = vmatpush1.msra.mxu0 0.0
    %710 = vmatprep.subr.mxu0 0.0
    %711 = vmatpush1.msra.mxu0 0.0
    %712 = vmatprep.subr.mxu0 0.0
    %713 = vmatpush1.msra.mxu0 0.0
    %714 = vmatprep.subr.mxu0 0.0
    %715 = vmatpush1.msra.mxu0 0.0
    %716 = vmatprep.subr.mxu0 0.0
    %717 = vmatpush1.msra.mxu0 0.0
    %718 = vmatprep.mubr.f32.mxu0 0.0
    %719 = vmatmul.mubr.f32.gmra.mrb[0].mxu0 %v649
    %v720 = vpop.f32.mrb[0].mxu0
    %v721 = vadd.f32 0.0, %v720
    %v722 = vpop.f32.mrb[0].mxu0
    %v723 = vadd.f32 0.0, %v722
    %724 = vdwg.mxu0
    %725 = vmatprep.subr.mxu0 %v387
    %726 = vmatpush1.msra.mxu0 %v386
    %727 = vmatprep.subr.mxu0 %v391
    %728 = vmatpush1.msra.mxu0 %v390
    %729 = vmatprep.subr.mxu0 %v395
    %730 = vmatpush1.msra.mxu0 %v394
    %731 = vmatprep.subr.mxu0 %v399
    %732 = vmatpush1.msra.mxu0 %v398
    %733 = vmatprep.subr.mxu0 %v403
    %734 = vmatpush1.msra.mxu0 %v402
    %735 = vmatprep.subr.mxu0 %v407
    %736 = vmatpush1.msra.mxu0 %v406
    %737 = vmatprep.subr.mxu0 %v411
    %738 = vmatpush1.msra.mxu0 %v410
    %739 = vmatprep.subr.mxu0 %v415
    %740 = vmatpush1.msra.mxu0 %v414
    %741 = vmatprep.subr.mxu0 %v419
    %742 = vmatpush1.msra.mxu0 %v418
    %743 = vmatprep.subr.mxu0 %v423
    %744 = vmatpush1.msra.mxu0 %v422
    %745 = vmatprep.subr.mxu0 %v427
    %746 = vmatpush1.msra.mxu0 %v426
    %747 = vmatprep.subr.mxu0 %v431
    %748 = vmatpush1.msra.mxu0 %v430
    %749 = vmatprep.subr.mxu0 %v435
    %750 = vmatpush1.msra.mxu0 %v434
    %751 = vmatprep.subr.mxu0 %v439
    %752 = vmatpush1.msra.mxu0 %v438
    %753 = vmatprep.subr.mxu0 %v443
    %754 = vmatpush1.msra.mxu0 %v442
    %755 = vmatprep.subr.mxu0 %v447
    %756 = vmatpush1.msra.mxu0 %v446
    %757 = vmatprep.subr.mxu0 0.0
    %758 = vmatpush1.msra.mxu0 0.0
    %759 = vmatprep.subr.mxu0 0.0
    %760 = vmatpush1.msra.mxu0 0.0
    %761 = vmatprep.subr.mxu0 0.0
    %762 = vmatpush1.msra.mxu0 0.0
    %763 = vmatprep.subr.mxu0 0.0
    %764 = vmatpush1.msra.mxu0 0.0
    %765 = vmatprep.subr.mxu0 0.0
    %766 = vmatpush1.msra.mxu0 0.0
    %767 = vmatprep.subr.mxu0 0.0
    %768 = vmatpush1.msra.mxu0 0.0
    %769 = vmatprep.subr.mxu0 0.0
    %770 = vmatpush1.msra.mxu0 0.0
    %771 = vmatprep.subr.mxu0 0.0
    %772 = vmatpush1.msra.mxu0 0.0
    %773 = vmatprep.subr.mxu0 0.0
    %774 = vmatpush1.msra.mxu0 0.0
    %775 = vmatprep.subr.mxu0 0.0
    %776 = vmatpush1.msra.mxu0 0.0
    %777 = vmatprep.subr.mxu0 0.0
    %778 = vmatpush1.msra.mxu0 0.0
    %779 = vmatprep.subr.mxu0 0.0
    %780 = vmatpush1.msra.mxu0 0.0
    %781 = vmatprep.subr.mxu0 0.0
    %782 = vmatpush1.msra.mxu0 0.0
    %783 = vmatprep.subr.mxu0 0.0
    %784 = vmatpush1.msra.mxu0 0.0
    %785 = vmatprep.subr.mxu0 0.0
    %786 = vmatpush1.msra.mxu0 0.0
    %787 = vmatprep.subr.mxu0 0.0
    %788 = vmatpush1.msra.mxu0 0.0
    %789 = vmatprep.mubr.f32.mxu0 0.0
    %790 = vmatmul.mubr.f32.gmra.mrb[0].mxu0 %v649
    %v791 = vpop.f32.mrb[0].mxu0
    %v792 = vadd.f32 0.0, %v791
    %v793 = vpop.f32.mrb[0].mxu0
    %v794 = vadd.f32 0.0, %v793
    %795 = vdwg.mxu0
    %v796 = vadd.f32 %v650, %v721
    %v797 = vadd.f32 %v651, %v723
    %v798 = vadd.f32 %v652, %v792
    %v799 = vadd.f32 %v653, %v794
    %v800 = vxor.u32 %v796, 2147483648
    %v801 = vmul.f32 %v800, 1.442695
    %v802 = vpow.pop %v801
    %v803 = vadd.f32 %v802, 1.0
    %v804 = vrcp.pop %v803
    %v805 = vmul.f32 1.0, %v804
    %v806 = vxor.u32 %v797, 2147483648
    %v807 = vmul.f32 %v806, 1.442695
    %v808 = vpow.pop %v807
    %v809 = vadd.f32 %v808, 1.0
    %v810 = vrcp.pop %v809
    %v811 = vmul.f32 1.0, %v810
    %v812 = vtanh.pop %v798
    %v813 = vxor.u32 %v799, 2147483648
    %v814 = vmul.f32 %v813, 1.442695
    %v815 = vpow.pop %v814
    %v816 = vadd.f32 %v815, 1.0
    %v817 = vrcp.pop %v816
    %v818 = vmul.f32 1.0, %v817
    %v819 = vmul.f32 %v811, %v647
    %v820 = vmul.f32 %v805, %v812
    %v821 = vadd.f32 %v819, %v820
    %v822 = vtanh.pop %v821
    %v823 = vmul.f32 %v818, %v822
    %v824 = vld [vmem:[#allocation2 + $0x60] sm:$0xff]
    %v825 = vld [vmem:[#allocation2 + $0x68] sm:$0xff]
    %v826 = vld [vmem:[#allocation2 + $0x70] sm:$0xff]
    %v827 = vld [vmem:[#allocation2 + $0x78] sm:$0xff]
    %828 = vmatprep.subr.mxu0 %v385
    %829 = vmatpush1.msra.mxu0 %v384
    %830 = vmatprep.subr.mxu0 %v389
    %831 = vmatpush1.msra.mxu0 %v388
    %832 = vmatprep.subr.mxu0 %v393
    %833 = vmatpush1.msra.mxu0 %v392
    %834 = vmatprep.subr.mxu0 %v397
    %835 = vmatpush1.msra.mxu0 %v396
    %836 = vmatprep.subr.mxu0 %v401
    %837 = vmatpush1.msra.mxu0 %v400
    %838 = vmatprep.subr.mxu0 %v405
    %839 = vmatpush1.msra.mxu0 %v404
    %840 = vmatprep.subr.mxu0 %v409
    %841 = vmatpush1.msra.mxu0 %v408
    %842 = vmatprep.subr.mxu0 %v413
    %843 = vmatpush1.msra.mxu0 %v412
    %844 = vmatprep.subr.mxu0 %v417
    %845 = vmatpush1.msra.mxu0 %v416
    %846 = vmatprep.subr.mxu0 %v421
    %847 = vmatpush1.msra.mxu0 %v420
    %848 = vmatprep.subr.mxu0 %v425
    %849 = vmatpush1.msra.mxu0 %v424
    %850 = vmatprep.subr.mxu0 %v429
    %851 = vmatpush1.msra.mxu0 %v428
    %852 = vmatprep.subr.mxu0 %v433
    %853 = vmatpush1.msra.mxu0 %v432
    %854 = vmatprep.subr.mxu0 %v437
    %855 = vmatpush1.msra.mxu0 %v436
    %856 = vmatprep.subr.mxu0 %v441
    %857 = vmatpush1.msra.mxu0 %v440
    %858 = vmatprep.subr.mxu0 %v445
    %859 = vmatpush1.msra.mxu0 %v444
    %860 = vmatprep.subr.mxu0 0.0
    %861 = vmatpush1.msra.mxu0 0.0
    %862 = vmatprep.subr.mxu0 0.0
    %863 = vmatpush1.msra.mxu0 0.0
    %864 = vmatprep.subr.mxu0 0.0
    %865 = vmatpush1.msra.mxu0 0.0
    %866 = vmatprep.subr.mxu0 0.0
    %867 = vmatpush1.msra.mxu0 0.0
    %868 = vmatprep.subr.mxu0 0.0
    %869 = vmatpush1.msra.mxu0 0.0
    %870 = vmatprep.subr.mxu0 0.0
    %871 = vmatpush1.msra.mxu0 0.0
    %872 = vmatprep.subr.mxu0 0.0
    %873 = vmatpush1.msra.mxu0 0.0
    %874 = vmatprep.subr.mxu0 0.0
    %875 = vmatpush1.msra.mxu0 0.0
    %876 = vmatprep.subr.mxu0 0.0
    %877 = vmatpush1.msra.mxu0 0.0
    %878 = vmatprep.subr.mxu0 0.0
    %879 = vmatpush1.msra.mxu0 0.0
    %880 = vmatprep.subr.mxu0 0.0
    %881 = vmatpush1.msra.mxu0 0.0
    %882 = vmatprep.subr.mxu0 0.0
    %883 = vmatpush1.msra.mxu0 0.0
    %884 = vmatprep.subr.mxu0 0.0
    %885 = vmatpush1.msra.mxu0 0.0
    %886 = vmatprep.subr.mxu0 0.0
    %887 = vmatpush1.msra.mxu0 0.0
    %888 = vmatprep.subr.mxu0 0.0
    %889 = vmatpush1.msra.mxu0 0.0
    %890 = vmatprep.subr.mxu0 0.0
    %891 = vmatpush1.msra.mxu0 0.0
    %892 = vmatprep.mubr.f32.mxu0 0.0
    %893 = vmatmul.mubr.f32.gmra.mrb[0].mxu0 %v823
    %v894 = vpop.f32.mrb[0].mxu0
    %v895 = vadd.f32 0.0, %v894
    %v896 = vpop.f32.mrb[0].mxu0
    %v897 = vadd.f32 0.0, %v896
    %898 = vdwg.mxu0
    %899 = vmatprep.subr.mxu0 %v387
    %900 = vmatpush1.msra.mxu0 %v386
    %901 = vmatprep.subr.mxu0 %v391
    %902 = vmatpush1.msra.mxu0 %v390
    %903 = vmatprep.subr.mxu0 %v395
    %904 = vmatpush1.msra.mxu0 %v394
    %905 = vmatprep.subr.mxu0 %v399
    %906 = vmatpush1.msra.mxu0 %v398
    %907 = vmatprep.subr.mxu0 %v403
    %908 = vmatpush1.msra.mxu0 %v402
    %909 = vmatprep.subr.mxu0 %v407
    %910 = vmatpush1.msra.mxu0 %v406
    %911 = vmatprep.subr.mxu0 %v411
    %912 = vmatpush1.msra.mxu0 %v410
    %913 = vmatprep.subr.mxu0 %v415
    %914 = vmatpush1.msra.mxu0 %v414
    %915 = vmatprep.subr.mxu0 %v419
    %916 = vmatpush1.msra.mxu0 %v418
    %917 = vmatprep.subr.mxu0 %v423
    %918 = vmatpush1.msra.mxu0 %v422
    %919 = vmatprep.subr.mxu0 %v427
    %920 = vmatpush1.msra.mxu0 %v426
    %921 = vmatprep.subr.mxu0 %v431
    %922 = vmatpush1.msra.mxu0 %v430
    %923 = vmatprep.subr.mxu0 %v435
    %924 = vmatpush1.msra.mxu0 %v434
    %925 = vmatprep.subr.mxu0 %v439
    %926 = vmatpush1.msra.mxu0 %v438
    %927 = vmatprep.subr.mxu0 %v443
    %928 = vmatpush1.msra.mxu0 %v442
    %929 = vmatprep.subr.mxu0 %v447
    %930 = vmatpush1.msra.mxu0 %v446
    %931 = vmatprep.subr.mxu0 0.0
    %932 = vmatpush1.msra.mxu0 0.0
    %933 = vmatprep.subr.mxu0 0.0
    %934 = vmatpush1.msra.mxu0 0.0
    %935 = vmatprep.subr.mxu0 0.0
    %936 = vmatpush1.msra.mxu0 0.0
    %937 = vmatprep.subr.mxu0 0.0
    %938 = vmatpush1.msra.mxu0 0.0
    %939 = vmatprep.subr.mxu0 0.0
    %940 = vmatpush1.msra.mxu0 0.0
    %941 = vmatprep.subr.mxu0 0.0
    %942 = vmatpush1.msra.mxu0 0.0
    %943 = vmatprep.subr.mxu0 0.0
    %944 = vmatpush1.msra.mxu0 0.0
    %945 = vmatprep.subr.mxu0 0.0
    %946 = vmatpush1.msra.mxu0 0.0
    %947 = vmatprep.subr.mxu0 0.0
    %948 = vmatpush1.msra.mxu0 0.0
    %949 = vmatprep.subr.mxu0 0.0
    %950 = vmatpush1.msra.mxu0 0.0
    %951 = vmatprep.subr.mxu0 0.0
    %952 = vmatpush1.msra.mxu0 0.0
    %953 = vmatprep.subr.mxu0 0.0
    %954 = vmatpush1.msra.mxu0 0.0
    %955 = vmatprep.subr.mxu0 0.0
    %956 = vmatpush1.msra.mxu0 0.0
    %957 = vmatprep.subr.mxu0 0.0
    %958 = vmatpush1.msra.mxu0 0.0
    %959 = vmatprep.subr.mxu0 0.0
    %960 = vmatpush1.msra.mxu0 0.0
    %961 = vmatprep.subr.mxu0 0.0
    %962 = vmatpush1.msra.mxu0 0.0
    %963 = vmatprep.mubr.f32.mxu0 0.0
    %964 = vmatmul.mubr.f32.gmra.mrb[0].mxu0 %v823
    %v965 = vpop.f32.mrb[0].mxu0
    %v966 = vadd.f32 0.0, %v965
    %v967 = vpop.f32.mrb[0].mxu0
    %v968 = vadd.f32 0.0, %v967
    %969 = vdwg.mxu0
    %v970 = vadd.f32 %v824, %v895
    %v971 = vadd.f32 %v825, %v897
    %v972 = vadd.f32 %v826, %v966
    %v973 = vadd.f32 %v827, %v968
    %v974 = vxor.u32 %v970, 2147483648
    %v975 = vmul.f32 %v974, 1.442695
    %v976 = vpow.pop %v975
    %v977 = vadd.f32 %v976, 1.0
    %v978 = vrcp.pop %v977
    %v979 = vmul.f32 1.0, %v978
    %v980 = vxor.u32 %v971, 2147483648
    %v981 = vmul.f32 %v980, 1.442695
    %v982 = vpow.pop %v981
    %v983 = vadd.f32 %v982, 1.0
    %v984 = vrcp.pop %v983
    %v985 = vmul.f32 1.0, %v984
    %v986 = vtanh.pop %v972
    %v987 = vxor.u32 %v973, 2147483648
    %v988 = vmul.f32 %v987, 1.442695
    %v989 = vpow.pop %v988
    %v990 = vadd.f32 %v989, 1.0
    %v991 = vrcp.pop %v990
    %v992 = vmul.f32 1.0, %v991
    %v993 = vmul.f32 %v985, %v821
    %v994 = vmul.f32 %v979, %v986
    %v995 = vadd.f32 %v993, %v994
    %v996 = vtanh.pop %v995
    %v997 = vmul.f32 %v992, %v996
    %v998 = vld [vmem:[#allocation2 + $0x80] sm:$0xff]
    %v999 = vld [vmem:[#allocation2 + $0x88] sm:$0xff]
    %v1000 = vld [vmem:[#allocation2 + $0x90] sm:$0xff]
    %v1001 = vld [vmem:[#allocation2 + $0x98] sm:$0xff]
    %1002 = vmatprep.subr.mxu0 %v385
    %1003 = vmatpush1.msra.mxu0 %v384
    %1004 = vmatprep.subr.mxu0 %v389
    %1005 = vmatpush1.msra.mxu0 %v388
    %1006 = vmatprep.subr.mxu0 %v393
    %1007 = vmatpush1.msra.mxu0 %v392
    %1008 = vmatprep.subr.mxu0 %v397
    %1009 = vmatpush1.msra.mxu0 %v396
    %1010 = vmatprep.subr.mxu0 %v401
    %1011 = vmatpush1.msra.mxu0 %v400
    %1012 = vmatprep.subr.mxu0 %v405
    %1013 = vmatpush1.msra.mxu0 %v404
    %1014 = vmatprep.subr.mxu0 %v409
    %1015 = vmatpush1.msra.mxu0 %v408
    %1016 = vmatprep.subr.mxu0 %v413
    %1017 = vmatpush1.msra.mxu0 %v412
    %1018 = vmatprep.subr.mxu0 %v417
    %1019 = vmatpush1.msra.mxu0 %v416
    %1020 = vmatprep.subr.mxu0 %v421
    %1021 = vmatpush1.msra.mxu0 %v420
    %1022 = vmatprep.subr.mxu0 %v425
    %1023 = vmatpush1.msra.mxu0 %v424
    %1024 = vmatprep.subr.mxu0 %v429
    %1025 = vmatpush1.msra.mxu0 %v428
    %1026 = vmatprep.subr.mxu0 %v433
    %1027 = vmatpush1.msra.mxu0 %v432
    %1028 = vmatprep.subr.mxu0 %v437
    %1029 = vmatpush1.msra.mxu0 %v436
    %1030 = vmatprep.subr.mxu0 %v441
    %1031 = vmatpush1.msra.mxu0 %v440
    %1032 = vmatprep.subr.mxu0 %v445
    %1033 = vmatpush1.msra.mxu0 %v444
    %1034 = vmatprep.subr.mxu0 0.0
    %1035 = vmatpush1.msra.mxu0 0.0
    %1036 = vmatprep.subr.mxu0 0.0
    %1037 = vmatpush1.msra.mxu0 0.0
    %1038 = vmatprep.subr.mxu0 0.0
    %1039 = vmatpush1.msra.mxu0 0.0
    %1040 = vmatprep.subr.mxu0 0.0
    %1041 = vmatpush1.msra.mxu0 0.0
    %1042 = vmatprep.subr.mxu0 0.0
    %1043 = vmatpush1.msra.mxu0 0.0
    %1044 = vmatprep.subr.mxu0 0.0
    %1045 = vmatpush1.msra.mxu0 0.0
    %1046 = vmatprep.subr.mxu0 0.0
    %1047 = vmatpush1.msra.mxu0 0.0
    %1048 = vmatprep.subr.mxu0 0.0
    %1049 = vmatpush1.msra.mxu0 0.0
    %1050 = vmatprep.subr.mxu0 0.0
    %1051 = vmatpush1.msra.mxu0 0.0
    %1052 = vmatprep.subr.mxu0 0.0
    %1053 = vmatpush1.msra.mxu0 0.0
    %1054 = vmatprep.subr.mxu0 0.0
    %1055 = vmatpush1.msra.mxu0 0.0
    %1056 = vmatprep.subr.mxu0 0.0
    %1057 = vmatpush1.msra.mxu0 0.0
    %1058 = vmatprep.subr.mxu0 0.0
    %1059 = vmatpush1.msra.mxu0 0.0
    %1060 = vmatprep.subr.mxu0 0.0
    %1061 = vmatpush1.msra.mxu0 0.0
    %1062 = vmatprep.subr.mxu0 0.0
    %1063 = vmatpush1.msra.mxu0 0.0
    %1064 = vmatprep.subr.mxu0 0.0
    %1065 = vmatpush1.msra.mxu0 0.0
    %1066 = vmatprep.mubr.f32.mxu0 0.0
    %1067 = vmatmul.mubr.f32.gmra.mrb[0].mxu0 %v997
    %v1068 = vpop.f32.mrb[0].mxu0
    %v1069 = vadd.f32 0.0, %v1068
    %v1070 = vpop.f32.mrb[0].mxu0
    %v1071 = vadd.f32 0.0, %v1070
    %1072 = vdwg.mxu0
    %1073 = vmatprep.subr.mxu0 %v387
    %1074 = vmatpush1.msra.mxu0 %v386
    %1075 = vmatprep.subr.mxu0 %v391
    %1076 = vmatpush1.msra.mxu0 %v390
    %1077 = vmatprep.subr.mxu0 %v395
    %1078 = vmatpush1.msra.mxu0 %v394
    %1079 = vmatprep.subr.mxu0 %v399
    %1080 = vmatpush1.msra.mxu0 %v398
    %1081 = vmatprep.subr.mxu0 %v403
    %1082 = vmatpush1.msra.mxu0 %v402
    %1083 = vmatprep.subr.mxu0 %v407
    %1084 = vmatpush1.msra.mxu0 %v406
    %1085 = vmatprep.subr.mxu0 %v411
    %1086 = vmatpush1.msra.mxu0 %v410
    %1087 = vmatprep.subr.mxu0 %v415
    %1088 = vmatpush1.msra.mxu0 %v414
    %1089 = vmatprep.subr.mxu0 %v419
    %1090 = vmatpush1.msra.mxu0 %v418
    %1091 = vmatprep.subr.mxu0 %v423
    %1092 = vmatpush1.msra.mxu0 %v422
    %1093 = vmatprep.subr.mxu0 %v427
    %1094 = vmatpush1.msra.mxu0 %v426
    %1095 = vmatprep.subr.mxu0 %v431
    %1096 = vmatpush1.msra.mxu0 %v430
    %1097 = vmatprep.subr.mxu0 %v435
    %1098 = vmatpush1.msra.mxu0 %v434
    %1099 = vmatprep.subr.mxu0 %v439
    %1100 = vmatpush1.msra.mxu0 %v438
    %1101 = vmatprep.subr.mxu0 %v443
    %1102 = vmatpush1.msra.mxu0 %v442
    %1103 = vmatprep.subr.mxu0 %v447
    %1104 = vmatpush1.msra.mxu0 %v446
    %1105 = vmatprep.subr.mxu0 0.0
    %1106 = vmatpush1.msra.mxu0 0.0
    %1107 = vmatprep.subr.mxu0 0.0
    %1108 = vmatpush1.msra.mxu0 0.0
    %1109 = vmatprep.subr.mxu0 0.0
    %1110 = vmatpush1.msra.mxu0 0.0
    %1111 = vmatprep.subr.mxu0 0.0
    %1112 = vmatpush1.msra.mxu0 0.0
    %1113 = vmatprep.subr.mxu0 0.0
    %1114 = vmatpush1.msra.mxu0 0.0
    %1115 = vmatprep.subr.mxu0 0.0
    %1116 = vmatpush1.msra.mxu0 0.0
    %1117 = vmatprep.subr.mxu0 0.0
    %1118 = vmatpush1.msra.mxu0 0.0
    %1119 = vmatprep.subr.mxu0 0.0
    %1120 = vmatpush1.msra.mxu0 0.0
    %1121 = vmatprep.subr.mxu0 0.0
    %1122 = vmatpush1.msra.mxu0 0.0
    %1123 = vmatprep.subr.mxu0 0.0
    %1124 = vmatpush1.msra.mxu0 0.0
    %1125 = vmatprep.subr.mxu0 0.0
    %1126 = vmatpush1.msra.mxu0 0.0
    %1127 = vmatprep.subr.mxu0 0.0
    %1128 = vmatpush1.msra.mxu0 0.0
    %1129 = vmatprep.subr.mxu0 0.0
    %1130 = vmatpush1.msra.mxu0 0.0
    %1131 = vmatprep.subr.mxu0 0.0
    %1132 = vmatpush1.msra.mxu0 0.0
    %1133 = vmatprep.subr.mxu0 0.0
    %1134 = vmatpush1.msra.mxu0 0.0
    %1135 = vmatprep.subr.mxu0 0.0
    %1136 = vmatpush1.msra.mxu0 0.0
    %1137 = vmatprep.mubr.f32.mxu0 0.0
    %1138 = vmatmul.mubr.f32.gmra.mrb[0].mxu0 %v997
    %v1139 = vpop.f32.mrb[0].mxu0
    %v1140 = vadd.f32 0.0, %v1139
    %v1141 = vpop.f32.mrb[0].mxu0
    %v1142 = vadd.f32 0.0, %v1141
    %1143 = vdwg.mxu0
    %v1144 = vadd.f32 %v998, %v1069
    %v1145 = vadd.f32 %v999, %v1071
    %v1146 = vadd.f32 %v1000, %v1140
    %v1147 = vadd.f32 %v1001, %v1142
    %v1148 = vxor.u32 %v1144, 2147483648
    %v1149 = vmul.f32 %v1148, 1.442695
    %v1150 = vpow.pop %v1149
    %v1151 = vadd.f32 %v1150, 1.0
    %v1152 = vrcp.pop %v1151
    %v1153 = vmul.f32 1.0, %v1152
    %v1154 = vxor.u32 %v1145, 2147483648
    %v1155 = vmul.f32 %v1154, 1.442695
    %v1156 = vpow.pop %v1155
    %v1157 = vadd.f32 %v1156, 1.0
    %v1158 = vrcp.pop %v1157
    %v1159 = vmul.f32 1.0, %v1158
    %v1160 = vtanh.pop %v1146
    %v1161 = vxor.u32 %v1147, 2147483648
    %v1162 = vmul.f32 %v1161, 1.442695
    %v1163 = vpow.pop %v1162
    %v1164 = vadd.f32 %v1163, 1.0
    %v1165 = vrcp.pop %v1164
    %v1166 = vmul.f32 1.0, %v1165
    %v1167 = vmul.f32 %v1159, %v995
    %v1168 = vmul.f32 %v1153, %v1160
    %v1169 = vadd.f32 %v1167, %v1168
    %v1170 = vtanh.pop %v1169
    %v1171 = vmul.f32 %v1166, %v1170
    %v1172 = vld [vmem:[#allocation2 + $0xa0] sm:$0xff]
    %v1173 = vld [vmem:[#allocation2 + $0xa8] sm:$0xff]
    %v1174 = vld [vmem:[#allocation2 + $0xb0] sm:$0xff]
    %v1175 = vld [vmem:[#allocation2 + $0xb8] sm:$0xff]
    %1176 = vmatprep.subr.mxu0 %v385
    %1177 = vmatpush1.msra.mxu0 %v384
    %1178 = vmatprep.subr.mxu0 %v389
    %1179 = vmatpush1.msra.mxu0 %v388
    %1180 = vmatprep.subr.mxu0 %v393
    %1181 = vmatpush1.msra.mxu0 %v392
    %1182 = vmatprep.subr.mxu0 %v397
    %1183 = vmatpush1.msra.mxu0 %v396
    %1184 = vmatprep.subr.mxu0 %v401
    %1185 = vmatpush1.msra.mxu0 %v400
    %1186 = vmatprep.subr.mxu0 %v405
    %1187 = vmatpush1.msra.mxu0 %v404
    %1188 = vmatprep.subr.mxu0 %v409
    %1189 = vmatpush1.msra.mxu0 %v408
    %1190 = vmatprep.subr.mxu0 %v413
    %1191 = vmatpush1.msra.mxu0 %v412
    %1192 = vmatprep.subr.mxu0 %v417
    %1193 = vmatpush1.msra.mxu0 %v416
    %1194 = vmatprep.subr.mxu0 %v421
    %1195 = vmatpush1.msra.mxu0 %v420
    %1196 = vmatprep.subr.mxu0 %v425
    %1197 = vmatpush1.msra.mxu0 %v424
    %1198 = vmatprep.subr.mxu0 %v429
    %1199 = vmatpush1.msra.mxu0 %v428
    %1200 = vmatprep.subr.mxu0 %v433
    %1201 = vmatpush1.msra.mxu0 %v432
    %1202 = vmatprep.subr.mxu0 %v437
    %1203 = vmatpush1.msra.mxu0 %v436
    %1204 = vmatprep.subr.mxu0 %v441
    %1205 = vmatpush1.msra.mxu0 %v440
    %1206 = vmatprep.subr.mxu0 %v445
    %1207 = vmatpush1.msra.mxu0 %v444
    %1208 = vmatprep.subr.mxu0 0.0
    %1209 = vmatpush1.msra.mxu0 0.0
    %1210 = vmatprep.subr.mxu0 0.0
    %1211 = vmatpush1.msra.mxu0 0.0
    %1212 = vmatprep.subr.mxu0 0.0
    %1213 = vmatpush1.msra.mxu0 0.0
    %1214 = vmatprep.subr.mxu0 0.0
    %1215 = vmatpush1.msra.mxu0 0.0
    %1216 = vmatprep.subr.mxu0 0.0
    %1217 = vmatpush1.msra.mxu0 0.0
    %1218 = vmatprep.subr.mxu0 0.0
    %1219 = vmatpush1.msra.mxu0 0.0
    %1220 = vmatprep.subr.mxu0 0.0
    %1221 = vmatpush1.msra.mxu0 0.0
    %1222 = vmatprep.subr.mxu0 0.0
    %1223 = vmatpush1.msra.mxu0 0.0
    %1224 = vmatprep.subr.mxu0 0.0
    %1225 = vmatpush1.msra.mxu0 0.0
    %1226 = vmatprep.subr.mxu0 0.0
    %1227 = vmatpush1.msra.mxu0 0.0
    %1228 = vmatprep.subr.mxu0 0.0
    %1229 = vmatpush1.msra.mxu0 0.0
    %1230 = vmatprep.subr.mxu0 0.0
    %1231 = vmatpush1.msra.mxu0 0.0
    %1232 = vmatprep.subr.mxu0 0.0
    %1233 = vmatpush1.msra.mxu0 0.0
    %1234 = vmatprep.subr.mxu0 0.0
    %1235 = vmatpush1.msra.mxu0 0.0
    %1236 = vmatprep.subr.mxu0 0.0
    %1237 = vmatpush1.msra.mxu0 0.0
    %1238 = vmatprep.subr.mxu0 0.0
    %1239 = vmatpush1.msra.mxu0 0.0
    %1240 = vmatprep.mubr.f32.mxu0 0.0
    %1241 = vmatmul.mubr.f32.gmra.mrb[0].mxu0 %v1171
    %v1242 = vpop.f32.mrb[0].mxu0
    %v1243 = vadd.f32 0.0, %v1242
    %v1244 = vpop.f32.mrb[0].mxu0
    %v1245 = vadd.f32 0.0, %v1244
    %1246 = vdwg.mxu0
    %1247 = vmatprep.subr.mxu0 %v387
    %1248 = vmatpush1.msra.mxu0 %v386
    %1249 = vmatprep.subr.mxu0 %v391
    %1250 = vmatpush1.msra.mxu0 %v390
    %1251 = vmatprep.subr.mxu0 %v395
    %1252 = vmatpush1.msra.mxu0 %v394
    %1253 = vmatprep.subr.mxu0 %v399
    %1254 = vmatpush1.msra.mxu0 %v398
    %1255 = vmatprep.subr.mxu0 %v403
    %1256 = vmatpush1.msra.mxu0 %v402
    %1257 = vmatprep.subr.mxu0 %v407
    %1258 = vmatpush1.msra.mxu0 %v406
    %1259 = vmatprep.subr.mxu0 %v411
    %1260 = vmatpush1.msra.mxu0 %v410
    %1261 = vmatprep.subr.mxu0 %v415
    %1262 = vmatpush1.msra.mxu0 %v414
    %1263 = vmatprep.subr.mxu0 %v419
    %1264 = vmatpush1.msra.mxu0 %v418
    %1265 = vmatprep.subr.mxu0 %v423
    %1266 = vmatpush1.msra.mxu0 %v422
    %1267 = vmatprep.subr.mxu0 %v427
    %1268 = vmatpush1.msra.mxu0 %v426
    %1269 = vmatprep.subr.mxu0 %v431
    %1270 = vmatpush1.msra.mxu0 %v430
    %1271 = vmatprep.subr.mxu0 %v435
    %1272 = vmatpush1.msra.mxu0 %v434
    %1273 = vmatprep.subr.mxu0 %v439
    %1274 = vmatpush1.msra.mxu0 %v438
    %1275 = vmatprep.subr.mxu0 %v443
    %1276 = vmatpush1.msra.mxu0 %v442
    %1277 = vmatprep.subr.mxu0 %v447
    %1278 = vmatpush1.msra.mxu0 %v446
    %1279 = vmatprep.subr.mxu0 0.0
    %1280 = vmatpush1.msra.mxu0 0.0
    %1281 = vmatprep.subr.mxu0 0.0
    %1282 = vmatpush1.msra.mxu0 0.0
    %1283 = vmatprep.subr.mxu0 0.0
    %1284 = vmatpush1.msra.mxu0 0.0
    %1285 = vmatprep.subr.mxu0 0.0
    %1286 = vmatpush1.msra.mxu0 0.0
    %1287 = vmatprep.subr.mxu0 0.0
    %1288 = vmatpush1.msra.mxu0 0.0
    %1289 = vmatprep.subr.mxu0 0.0
    %1290 = vmatpush1.msra.mxu0 0.0
    %1291 = vmatprep.subr.mxu0 0.0
    %1292 = vmatpush1.msra.mxu0 0.0
    %1293 = vmatprep.subr.mxu0 0.0
    %1294 = vmatpush1.msra.mxu0 0.0
    %1295 = vmatprep.subr.mxu0 0.0
    %1296 = vmatpush1.msra.mxu0 0.0
    %1297 = vmatprep.subr.mxu0 0.0
    %1298 = vmatpush1.msra.mxu0 0.0
    %1299 = vmatprep.subr.mxu0 0.0
    %1300 = vmatpush1.msra.mxu0 0.0
    %1301 = vmatprep.subr.mxu0 0.0
    %1302 = vmatpush1.msra.mxu0 0.0
    %1303 = vmatprep.subr.mxu0 0.0
    %1304 = vmatpush1.msra.mxu0 0.0
    %1305 = vmatprep.subr.mxu0 0.0
    %1306 = vmatpush1.msra.mxu0 0.0
    %1307 = vmatprep.subr.mxu0 0.0
    %1308 = vmatpush1.msra.mxu0 0.0
    %1309 = vmatprep.subr.mxu0 0.0
    %1310 = vmatpush1.msra.mxu0 0.0
    %1311 = vmatprep.mubr.f32.mxu0 0.0
    %1312 = vmatmul.mubr.f32.gmra.mrb[0].mxu0 %v1171
    %v1313 = vpop.f32.mrb[0].mxu0
    %v1314 = vadd.f32 0.0, %v1313
    %v1315 = vpop.f32.mrb[0].mxu0
    %v1316 = vadd.f32 0.0, %v1315
    %1317 = vdwg.mxu0
    %v1318 = vadd.f32 %v1172, %v1243
    %v1319 = vadd.f32 %v1173, %v1245
    %v1320 = vadd.f32 %v1174, %v1314
    %v1321 = vadd.f32 %v1175, %v1316
    %v1322 = vxor.u32 %v1318, 2147483648
    %v1323 = vmul.f32 %v1322, 1.442695
    %v1324 = vpow.pop %v1323
    %v1325 = vadd.f32 %v1324, 1.0
    %v1326 = vrcp.pop %v1325
    %v1327 = vmul.f32 1.0, %v1326
    %v1328 = vxor.u32 %v1319, 2147483648
    %v1329 = vmul.f32 %v1328, 1.442695
    %v1330 = vpow.pop %v1329
    %v1331 = vadd.f32 %v1330, 1.0
    %v1332 = vrcp.pop %v1331
    %v1333 = vmul.f32 1.0, %v1332
    %v1334 = vtanh.pop %v1320
    %v1335 = vxor.u32 %v1321, 2147483648
    %v1336 = vmul.f32 %v1335, 1.442695
    %v1337 = vpow.pop %v1336
    %v1338 = vadd.f32 %v1337, 1.0
    %v1339 = vrcp.pop %v1338
    %v1340 = vmul.f32 1.0, %v1339
    %v1341 = vmul.f32 %v1333, %v1169
    %v1342 = vmul.f32 %v1327, %v1334
    %v1343 = vadd.f32 %v1341, %v1342
    %v1344 = vtanh.pop %v1343
    %v1345 = vmul.f32 %v1340, %v1344
    %v1346 = vld [vmem:[#allocation2 + $0xc0] sm:$0xff]
    %v1347 = vld [vmem:[#allocation2 + $0xc8] sm:$0xff]
    %v1348 = vld [vmem:[#allocation2 + $0xd0] sm:$0xff]
    %v1349 = vld [vmem:[#allocation2 + $0xd8] sm:$0xff]
    %1350 = vmatprep.subr.mxu0 %v385
    %1351 = vmatpush1.msra.mxu0 %v384
    %1352 = vmatprep.subr.mxu0 %v389
    %1353 = vmatpush1.msra.mxu0 %v388
    %1354 = vmatprep.subr.mxu0 %v393
    %1355 = vmatpush1.msra.mxu0 %v392
    %1356 = vmatprep.subr.mxu0 %v397
    %1357 = vmatpush1.msra.mxu0 %v396
    %1358 = vmatprep.subr.mxu0 %v401
    %1359 = vmatpush1.msra.mxu0 %v400
    %1360 = vmatprep.subr.mxu0 %v405
    %1361 = vmatpush1.msra.mxu0 %v404
    %1362 = vmatprep.subr.mxu0 %v409
    %1363 = vmatpush1.msra.mxu0 %v408
    %1364 = vmatprep.subr.mxu0 %v413
    %1365 = vmatpush1.msra.mxu0 %v412
    %1366 = vmatprep.subr.mxu0 %v417
    %1367 = vmatpush1.msra.mxu0 %v416
    %1368 = vmatprep.subr.mxu0 %v421
    %1369 = vmatpush1.msra.mxu0 %v420
    %1370 = vmatprep.subr.mxu0 %v425
    %1371 = vmatpush1.msra.mxu0 %v424
    %1372 = vmatprep.subr.mxu0 %v429
    %1373 = vmatpush1.msra.mxu0 %v428
    %1374 = vmatprep.subr.mxu0 %v433
    %1375 = vmatpush1.msra.mxu0 %v432
    %1376 = vmatprep.subr.mxu0 %v437
    %1377 = vmatpush1.msra.mxu0 %v436
    %1378 = vmatprep.subr.mxu0 %v441
    %1379 = vmatpush1.msra.mxu0 %v440
    %1380 = vmatprep.subr.mxu0 %v445
    %1381 = vmatpush1.msra.mxu0 %v444
    %1382 = vmatprep.subr.mxu0 0.0
    %1383 = vmatpush1.msra.mxu0 0.0
    %1384 = vmatprep.subr.mxu0 0.0
    %1385 = vmatpush1.msra.mxu0 0.0
    %1386 = vmatprep.subr.mxu0 0.0
    %1387 = vmatpush1.msra.mxu0 0.0
    %1388 = vmatprep.subr.mxu0 0.0
    %1389 = vmatpush1.msra.mxu0 0.0
    %1390 = vmatprep.subr.mxu0 0.0
    %1391 = vmatpush1.msra.mxu0 0.0
    %1392 = vmatprep.subr.mxu0 0.0
    %1393 = vmatpush1.msra.mxu0 0.0
    %1394 = vmatprep.subr.mxu0 0.0
    %1395 = vmatpush1.msra.mxu0 0.0
    %1396 = vmatprep.subr.mxu0 0.0
    %1397 = vmatpush1.msra.mxu0 0.0
    %1398 = vmatprep.subr.mxu0 0.0
    %1399 = vmatpush1.msra.mxu0 0.0
    %1400 = vmatprep.subr.mxu0 0.0
    %1401 = vmatpush1.msra.mxu0 0.0
    %1402 = vmatprep.subr.mxu0 0.0
    %1403 = vmatpush1.msra.mxu0 0.0
    %1404 = vmatprep.subr.mxu0 0.0
    %1405 = vmatpush1.msra.mxu0 0.0
    %1406 = vmatprep.subr.mxu0 0.0
    %1407 = vmatpush1.msra.mxu0 0.0
    %1408 = vmatprep.subr.mxu0 0.0
    %1409 = vmatpush1.msra.mxu0 0.0
    %1410 = vmatprep.subr.mxu0 0.0
    %1411 = vmatpush1.msra.mxu0 0.0
    %1412 = vmatprep.subr.mxu0 0.0
    %1413 = vmatpush1.msra.mxu0 0.0
    %1414 = vmatprep.mubr.f32.mxu0 0.0
    %1415 = vmatmul.mubr.f32.gmra.mrb[0].mxu0 %v1345
    %v1416 = vpop.f32.mrb[0].mxu0
    %v1417 = vadd.f32 0.0, %v1416
    %v1418 = vpop.f32.mrb[0].mxu0
    %v1419 = vadd.f32 0.0, %v1418
    %1420 = vdwg.mxu0
    %1421 = vmatprep.subr.mxu0 %v387
    %1422 = vmatpush1.msra.mxu0 %v386
    %1423 = vmatprep.subr.mxu0 %v391
    %1424 = vmatpush1.msra.mxu0 %v390
    %1425 = vmatprep.subr.mxu0 %v395
    %1426 = vmatpush1.msra.mxu0 %v394
    %1427 = vmatprep.subr.mxu0 %v399
    %1428 = vmatpush1.msra.mxu0 %v398
    %1429 = vmatprep.subr.mxu0 %v403
    %1430 = vmatpush1.msra.mxu0 %v402
    %1431 = vmatprep.subr.mxu0 %v407
    %1432 = vmatpush1.msra.mxu0 %v406
    %1433 = vmatprep.subr.mxu0 %v411
    %1434 = vmatpush1.msra.mxu0 %v410
    %1435 = vmatprep.subr.mxu0 %v415
    %1436 = vmatpush1.msra.mxu0 %v414
    %1437 = vmatprep.subr.mxu0 %v419
    %1438 = vmatpush1.msra.mxu0 %v418
    %1439 = vmatprep.subr.mxu0 %v423
    %1440 = vmatpush1.msra.mxu0 %v422
    %1441 = vmatprep.subr.mxu0 %v427
    %1442 = vmatpush1.msra.mxu0 %v426
    %1443 = vmatprep.subr.mxu0 %v431
    %1444 = vmatpush1.msra.mxu0 %v430
    %1445 = vmatprep.subr.mxu0 %v435
    %1446 = vmatpush1.msra.mxu0 %v434
    %1447 = vmatprep.subr.mxu0 %v439
    %1448 = vmatpush1.msra.mxu0 %v438
    %1449 = vmatprep.subr.mxu0 %v443
    %1450 = vmatpush1.msra.mxu0 %v442
    %1451 = vmatprep.subr.mxu0 %v447
    %1452 = vmatpush1.msra.mxu0 %v446
    %1453 = vmatprep.subr.mxu0 0.0
    %1454 = vmatpush1.msra.mxu0 0.0
    %1455 = vmatprep.subr.mxu0 0.0
    %1456 = vmatpush1.msra.mxu0 0.0
    %1457 = vmatprep.subr.mxu0 0.0
    %1458 = vmatpush1.msra.mxu0 0.0
    %1459 = vmatprep.subr.mxu0 0.0
    %1460 = vmatpush1.msra.mxu0 0.0
    %1461 = vmatprep.subr.mxu0 0.0
    %1462 = vmatpush1.msra.mxu0 0.0
    %1463 = vmatprep.subr.mxu0 0.0
    %1464 = vmatpush1.msra.mxu0 0.0
    %1465 = vmatprep.subr.mxu0 0.0
    %1466 = vmatpush1.msra.mxu0 0.0
    %1467 = vmatprep.subr.mxu0 0.0
    %1468 = vmatpush1.msra.mxu0 0.0
    %1469 = vmatprep.subr.mxu0 0.0
    %1470 = vmatpush1.msra.mxu0 0.0
    %1471 = vmatprep.subr.mxu0 0.0
    %1472 = vmatpush1.msra.mxu0 0.0
    %1473 = vmatprep.subr.mxu0 0.0
    %1474 = vmatpush1.msra.mxu0 0.0
    %1475 = vmatprep.subr.mxu0 0.0
    %1476 = vmatpush1.msra.mxu0 0.0
    %1477 = vmatprep.subr.mxu0 0.0
    %1478 = vmatpush1.msra.mxu0 0.0
    %1479 = vmatprep.subr.mxu0 0.0
    %1480 = vmatpush1.msra.mxu0 0.0
    %1481 = vmatprep.subr.mxu0 0.0
    %1482 = vmatpush1.msra.mxu0 0.0
    %1483 = vmatprep.subr.mxu0 0.0
    %1484 = vmatpush1.msra.mxu0 0.0
    %1485 = vmatprep.mubr.f32.mxu0 0.0
    %1486 = vmatmul.mubr.f32.gmra.mrb[0].mxu0 %v1345
    %v1487 = vpop.f32.mrb[0].mxu0
    %v1488 = vadd.f32 0.0, %v1487
    %v1489 = vpop.f32.mrb[0].mxu0
    %v1490 = vadd.f32 0.0, %v1489
    %1491 = vdwg.mxu0
    %v1492 = vadd.f32 %v1346, %v1417
    %v1493 = vadd.f32 %v1347, %v1419
    %v1494 = vadd.f32 %v1348, %v1488
    %v1495 = vadd.f32 %v1349, %v1490
    %v1496 = vxor.u32 %v1492, 2147483648
    %v1497 = vmul.f32 %v1496, 1.442695
    %v1498 = vpow.pop %v1497
    %v1499 = vadd.f32 %v1498, 1.0
    %v1500 = vrcp.pop %v1499
    %v1501 = vmul.f32 1.0, %v1500
    %v1502 = vxor.u32 %v1493, 2147483648
    %v1503 = vmul.f32 %v1502, 1.442695
    %v1504 = vpow.pop %v1503
    %v1505 = vadd.f32 %v1504, 1.0
    %v1506 = vrcp.pop %v1505
    %v1507 = vmul.f32 1.0, %v1506
    %v1508 = vtanh.pop %v1494
    %v1509 = vxor.u32 %v1495, 2147483648
    %v1510 = vmul.f32 %v1509, 1.442695
    %v1511 = vpow.pop %v1510
    %v1512 = vadd.f32 %v1511, 1.0
    %v1513 = vrcp.pop %v1512
    %v1514 = vmul.f32 1.0, %v1513
    %v1515 = vmul.f32 %v1507, %v1343
    %v1516 = vmul.f32 %v1501, %v1508
    %v1517 = vadd.f32 %v1515, %v1516
    %v1518 = vtanh.pop %v1517
    %v1519 = vmul.f32 %v1514, %v1518
    %v1520 = vld [vmem:[#allocation2 + $0xe0] sm:$0xff]
    %v1521 = vld [vmem:[#allocation2 + $0xe8] sm:$0xff]
    %v1522 = vld [vmem:[#allocation2 + $0xf0] sm:$0xff]
    %v1523 = vld [vmem:[#allocation2 + $0xf8] sm:$0xff]
    %1524 = vmatprep.subr.mxu0 %v385
    %1525 = vmatpush1.msra.mxu0 %v384
    %1526 = vmatprep.subr.mxu0 %v389
    %1527 = vmatpush1.msra.mxu0 %v388
    %1528 = vmatprep.subr.mxu0 %v393
    %1529 = vmatpush1.msra.mxu0 %v392
    %1530 = vmatprep.subr.mxu0 %v397
    %1531 = vmatpush1.msra.mxu0 %v396
    %1532 = vmatprep.subr.mxu0 %v401
    %1533 = vmatpush1.msra.mxu0 %v400
    %1534 = vmatprep.subr.mxu0 %v405
    %1535 = vmatpush1.msra.mxu0 %v404
    %1536 = vmatprep.subr.mxu0 %v409
    %1537 = vmatpush1.msra.mxu0 %v408
    %1538 = vmatprep.subr.mxu0 %v413
    %1539 = vmatpush1.msra.mxu0 %v412
    %1540 = vmatprep.subr.mxu0 %v417
    %1541 = vmatpush1.msra.mxu0 %v416
    %1542 = vmatprep.subr.mxu0 %v421
    %1543 = vmatpush1.msra.mxu0 %v420
    %1544 = vmatprep.subr.mxu0 %v425
    %1545 = vmatpush1.msra.mxu0 %v424
    %1546 = vmatprep.subr.mxu0 %v429
    %1547 = vmatpush1.msra.mxu0 %v428
    %1548 = vmatprep.subr.mxu0 %v433
    %1549 = vmatpush1.msra.mxu0 %v432
    %1550 = vmatprep.subr.mxu0 %v437
    %1551 = vmatpush1.msra.mxu0 %v436
    %1552 = vmatprep.subr.mxu0 %v441
    %1553 = vmatpush1.msra.mxu0 %v440
    %1554 = vmatprep.subr.mxu0 %v445
    %1555 = vmatpush1.msra.mxu0 %v444
    %1556 = vmatprep.subr.mxu0 0.0
    %1557 = vmatpush1.msra.mxu0 0.0
    %1558 = vmatprep.subr.mxu0 0.0
    %1559 = vmatpush1.msra.mxu0 0.0
    %1560 = vmatprep.subr.mxu0 0.0
    %1561 = vmatpush1.msra.mxu0 0.0
    %1562 = vmatprep.subr.mxu0 0.0
    %1563 = vmatpush1.msra.mxu0 0.0
    %1564 = vmatprep.subr.mxu0 0.0
    %1565 = vmatpush1.msra.mxu0 0.0
    %1566 = vmatprep.subr.mxu0 0.0
    %1567 = vmatpush1.msra.mxu0 0.0
    %1568 = vmatprep.subr.mxu0 0.0
    %1569 = vmatpush1.msra.mxu0 0.0
    %1570 = vmatprep.subr.mxu0 0.0
    %1571 = vmatpush1.msra.mxu0 0.0
    %1572 = vmatprep.subr.mxu0 0.0
    %1573 = vmatpush1.msra.mxu0 0.0
    %1574 = vmatprep.subr.mxu0 0.0
    %1575 = vmatpush1.msra.mxu0 0.0
    %1576 = vmatprep.subr.mxu0 0.0
    %1577 = vmatpush1.msra.mxu0 0.0
    %1578 = vmatprep.subr.mxu0 0.0
    %1579 = vmatpush1.msra.mxu0 0.0
    %1580 = vmatprep.subr.mxu0 0.0
    %1581 = vmatpush1.msra.mxu0 0.0
    %1582 = vmatprep.subr.mxu0 0.0
    %1583 = vmatpush1.msra.mxu0 0.0
    %1584 = vmatprep.subr.mxu0 0.0
    %1585 = vmatpush1.msra.mxu0 0.0
    %1586 = vmatprep.subr.mxu0 0.0
    %1587 = vmatpush1.msra.mxu0 0.0
    %1588 = vmatprep.mubr.f32.mxu0 0.0
    %1589 = vmatmul.mubr.f32.gmra.mrb[0].mxu0 %v1519
    %v1590 = vpop.f32.mrb[0].mxu0
    %v1591 = vadd.f32 0.0, %v1590
    %v1592 = vpop.f32.mrb[0].mxu0
    %v1593 = vadd.f32 0.0, %v1592
    %1594 = vdwg.mxu0
    %1595 = vmatprep.subr.mxu0 %v387
    %1596 = vmatpush1.msra.mxu0 %v386
    %1597 = vmatprep.subr.mxu0 %v391
    %1598 = vmatpush1.msra.mxu0 %v390
    %1599 = vmatprep.subr.mxu0 %v395
    %1600 = vmatpush1.msra.mxu0 %v394
    %1601 = vmatprep.subr.mxu0 %v399
    %1602 = vmatpush1.msra.mxu0 %v398
    %1603 = vmatprep.subr.mxu0 %v403
    %1604 = vmatpush1.msra.mxu0 %v402
    %1605 = vmatprep.subr.mxu0 %v407
    %1606 = vmatpush1.msra.mxu0 %v406
    %1607 = vmatprep.subr.mxu0 %v411
    %1608 = vmatpush1.msra.mxu0 %v410
    %1609 = vmatprep.subr.mxu0 %v415
    %1610 = vmatpush1.msra.mxu0 %v414
    %1611 = vmatprep.subr.mxu0 %v419
    %1612 = vmatpush1.msra.mxu0 %v418
    %1613 = vmatprep.subr.mxu0 %v423
    %1614 = vmatpush1.msra.mxu0 %v422
    %1615 = vmatprep.subr.mxu0 %v427
    %1616 = vmatpush1.msra.mxu0 %v426
    %1617 = vmatprep.subr.mxu0 %v431
    %1618 = vmatpush1.msra.mxu0 %v430
    %1619 = vmatprep.subr.mxu0 %v435
    %1620 = vmatpush1.msra.mxu0 %v434
    %1621 = vmatprep.subr.mxu0 %v439
    %1622 = vmatpush1.msra.mxu0 %v438
    %1623 = vmatprep.subr.mxu0 %v443
    %1624 = vmatpush1.msra.mxu0 %v442
    %1625 = vmatprep.subr.mxu0 %v447
    %1626 = vmatpush1.msra.mxu0 %v446
    %1627 = vmatprep.subr.mxu0 0.0
    %1628 = vmatpush1.msra.mxu0 0.0
    %1629 = vmatprep.subr.mxu0 0.0
    %1630 = vmatpush1.msra.mxu0 0.0
    %1631 = vmatprep.subr.mxu0 0.0
    %1632 = vmatpush1.msra.mxu0 0.0
    %1633 = vmatprep.subr.mxu0 0.0
    %1634 = vmatpush1.msra.mxu0 0.0
    %1635 = vmatprep.subr.mxu0 0.0
    %1636 = vmatpush1.msra.mxu0 0.0
    %1637 = vmatprep.subr.mxu0 0.0
    %1638 = vmatpush1.msra.mxu0 0.0
    %1639 = vmatprep.subr.mxu0 0.0
    %1640 = vmatpush1.msra.mxu0 0.0
    %1641 = vmatprep.subr.mxu0 0.0
    %1642 = vmatpush1.msra.mxu0 0.0
    %1643 = vmatprep.subr.mxu0 0.0
    %1644 = vmatpush1.msra.mxu0 0.0
    %1645 = vmatprep.subr.mxu0 0.0
    %1646 = vmatpush1.msra.mxu0 0.0
    %1647 = vmatprep.subr.mxu0 0.0
    %1648 = vmatpush1.msra.mxu0 0.0
    %1649 = vmatprep.subr.mxu0 0.0
    %1650 = vmatpush1.msra.mxu0 0.0
    %1651 = vmatprep.subr.mxu0 0.0
    %1652 = vmatpush1.msra.mxu0 0.0
    %1653 = vmatprep.subr.mxu0 0.0
    %1654 = vmatpush1.msra.mxu0 0.0
    %1655 = vmatprep.subr.mxu0 0.0
    %1656 = vmatpush1.msra.mxu0 0.0
    %1657 = vmatprep.subr.mxu0 0.0
    %1658 = vmatpush1.msra.mxu0 0.0
    %1659 = vmatprep.mubr.f32.mxu0 0.0
    %1660 = vmatmul.mubr.f32.gmra.mrb[0].mxu0 %v1519
    %v1661 = vpop.f32.mrb[0].mxu0
    %v1662 = vadd.f32 0.0, %v1661
    %v1663 = vpop.f32.mrb[0].mxu0
    %v1664 = vadd.f32 0.0, %v1663
    %1665 = vdwg.mxu0
    %v1666 = vadd.f32 %v1520, %v1591
    %v1667 = vadd.f32 %v1521, %v1593
    %v1668 = vadd.f32 %v1522, %v1662
    %v1669 = vadd.f32 %v1523, %v1664
    %v1670 = vxor.u32 %v1666, 2147483648
    %v1671 = vmul.f32 %v1670, 1.442695
    %v1672 = vpow.pop %v1671
    %v1673 = vadd.f32 %v1672, 1.0
    %v1674 = vrcp.pop %v1673
    %v1675 = vmul.f32 1.0, %v1674
    %v1676 = vxor.u32 %v1667, 2147483648
    %v1677 = vmul.f32 %v1676, 1.442695
    %v1678 = vpow.pop %v1677
    %v1679 = vadd.f32 %v1678, 1.0
    %v1680 = vrcp.pop %v1679
    %v1681 = vmul.f32 1.0, %v1680
    %v1682 = vtanh.pop %v1668
    %v1683 = vxor.u32 %v1669, 2147483648
    %v1684 = vmul.f32 %v1683, 1.442695
    %v1685 = vpow.pop %v1684
    %v1686 = vadd.f32 %v1685, 1.0
    %v1687 = vrcp.pop %v1686
    %v1688 = vmul.f32 1.0, %v1687
    %v1689 = vmul.f32 %v1681, %v1517
    %v1690 = vmul.f32 %v1675, %v1682
    %v1691 = vadd.f32 %v1689, %v1690
    %v1692 = vtanh.pop %v1691
    %v1693 = vmul.f32 %v1688, %v1692
    %v1694 = vmax.f32 %v1693, 0.0
    %s1695 = smul.u32 8, 16
    %s1696 = smul.u32 %s1695, 4
    %s1697 = sshll.u32 %s1696, 4
    %1698 = dma.done [#allocation5], %s1697
    %v1699 = vld [vmem:[#allocation3] sm:$0xff]
    %v1700 = vld [vmem:[#allocation3 + $0x8] sm:$0xff]
    %v1701 = vld [vmem:[#allocation3 + $0x10] sm:$0xff]
    %v1702 = vld [vmem:[#allocation3 + $0x18] sm:$0xff]
    %v1703 = vld [vmem:[#allocation3 + $0x20] sm:$0xff]
    %v1704 = vld [vmem:[#allocation3 + $0x28] sm:$0xff]
    %v1705 = vld [vmem:[#allocation3 + $0x30] sm:$0xff]
    %v1706 = vld [vmem:[#allocation3 + $0x38] sm:$0xff]
    %v1707 = vld [vmem:[#allocation3 + $0x40] sm:$0xff]
    %v1708 = vld [vmem:[#allocation3 + $0x48] sm:$0xff]
    %v1709 = vld [vmem:[#allocation3 + $0x50] sm:$0xff]
    %v1710 = vld [vmem:[#allocation3 + $0x58] sm:$0xff]
    %v1711 = vld [vmem:[#allocation3 + $0x60] sm:$0xff]
    %v1712 = vld [vmem:[#allocation3 + $0x68] sm:$0xff]
    %v1713 = vld [vmem:[#allocation3 + $0x70] sm:$0xff]
    %v1714 = vld [vmem:[#allocation3 + $0x78] sm:$0xff]
    %v1715 = vld [vmem:[#allocation3 + $0x80] sm:$0xff]
    %v1716 = vld [vmem:[#allocation3 + $0x88] sm:$0xff]
    %v1717 = vld [vmem:[#allocation3 + $0x90] sm:$0xff]
    %v1718 = vld [vmem:[#allocation3 + $0x98] sm:$0xff]
    %v1719 = vld [vmem:[#allocation3 + $0xa0] sm:$0xff]
    %v1720 = vld [vmem:[#allocation3 + $0xa8] sm:$0xff]
    %v1721 = vld [vmem:[#allocation3 + $0xb0] sm:$0xff]
    %v1722 = vld [vmem:[#allocation3 + $0xb8] sm:$0xff]
    %v1723 = vld [vmem:[#allocation3 + $0xc0] sm:$0xff]
    %v1724 = vld [vmem:[#allocation3 + $0xc8] sm:$0xff]
    %v1725 = vld [vmem:[#allocation3 + $0xd0] sm:$0xff]
    %v1726 = vld [vmem:[#allocation3 + $0xd8] sm:$0xff]
    %v1727 = vld [vmem:[#allocation3 + $0xe0] sm:$0xff]
    %v1728 = vld [vmem:[#allocation3 + $0xe8] sm:$0xff]
    %v1729 = vld [vmem:[#allocation3 + $0xf0] sm:$0xff]
    %v1730 = vld [vmem:[#allocation3 + $0xf8] sm:$0xff]
    %v1731 = vld [vmem:[#allocation3 + $0x100] sm:$0xff]
    %v1732 = vld [vmem:[#allocation3 + $0x108] sm:$0xff]
    %v1733 = vld [vmem:[#allocation3 + $0x110] sm:$0xff]
    %v1734 = vld [vmem:[#allocation3 + $0x118] sm:$0xff]
    %v1735 = vld [vmem:[#allocation3 + $0x120] sm:$0xff]
    %v1736 = vld [vmem:[#allocation3 + $0x128] sm:$0xff]
    %v1737 = vld [vmem:[#allocation3 + $0x130] sm:$0xff]
    %v1738 = vld [vmem:[#allocation3 + $0x138] sm:$0xff]
    %v1739 = vld [vmem:[#allocation3 + $0x140] sm:$0xff]
    %v1740 = vld [vmem:[#allocation3 + $0x148] sm:$0xff]
    %v1741 = vld [vmem:[#allocation3 + $0x150] sm:$0xff]
    %v1742 = vld [vmem:[#allocation3 + $0x158] sm:$0xff]
    %v1743 = vld [vmem:[#allocation3 + $0x160] sm:$0xff]
    %v1744 = vld [vmem:[#allocation3 + $0x168] sm:$0xff]
    %v1745 = vld [vmem:[#allocation3 + $0x170] sm:$0xff]
    %v1746 = vld [vmem:[#allocation3 + $0x178] sm:$0xff]
    %v1747 = vld [vmem:[#allocation3 + $0x180] sm:$0xff]
    %v1748 = vld [vmem:[#allocation3 + $0x188] sm:$0xff]
    %v1749 = vld [vmem:[#allocation3 + $0x190] sm:$0xff]
    %v1750 = vld [vmem:[#allocation3 + $0x198] sm:$0xff]
    %v1751 = vld [vmem:[#allocation3 + $0x1a0] sm:$0xff]
    %v1752 = vld [vmem:[#allocation3 + $0x1a8] sm:$0xff]
    %v1753 = vld [vmem:[#allocation3 + $0x1b0] sm:$0xff]
    %v1754 = vld [vmem:[#allocation3 + $0x1b8] sm:$0xff]
    %v1755 = vld [vmem:[#allocation3 + $0x1c0] sm:$0xff]
    %v1756 = vld [vmem:[#allocation3 + $0x1c8] sm:$0xff]
    %v1757 = vld [vmem:[#allocation3 + $0x1d0] sm:$0xff]
    %v1758 = vld [vmem:[#allocation3 + $0x1d8] sm:$0xff]
    %v1759 = vld [vmem:[#allocation3 + $0x1e0] sm:$0xff]
    %v1760 = vld [vmem:[#allocation3 + $0x1e8] sm:$0xff]
    %v1761 = vld [vmem:[#allocation3 + $0x1f0] sm:$0xff]
    %v1762 = vld [vmem:[#allocation3 + $0x1f8] sm:$0xff]
    %v1763 = vld [vmem:[%s6] sm:$0xf]
    %v1765 = vlaneseq
    %v1766 = vshrl.u32 %v1765, 7
    %v1767 = vsub.s32 0, %v1766
    %v1768 = vrot.slane %v1763, %v1767
    %v1769 = vlaneseq
    %v1770 = vshrl.u32 %v1769, 7
    %v1771 = vsub.s32 1, %v1770
    %v1772 = vrot.slane %v1763, %v1771
    %v1773 = vlaneseq
    %v1774 = vshrl.u32 %v1773, 7
    %v1775 = vsub.s32 2, %v1774
    %v1776 = vrot.slane %v1763, %v1775
    %v1777 = vlaneseq
    %v1778 = vshrl.u32 %v1777, 7
    %v1779 = vsub.s32 3, %v1778
    %v1780 = vrot.slane %v1763, %v1779
    %1785 = vmatprep.subr.mxu0 %v1700
    %1786 = vmatpush1.msra.mxu0 %v1699
    %1787 = vmatprep.subr.mxu0 %v1704
    %1788 = vmatpush1.msra.mxu0 %v1703
    %1789 = vmatprep.subr.mxu0 %v1708
    %1790 = vmatpush1.msra.mxu0 %v1707
    %1791 = vmatprep.subr.mxu0 %v1712
    %1792 = vmatpush1.msra.mxu0 %v1711
    %1793 = vmatprep.subr.mxu0 %v1716
    %1794 = vmatpush1.msra.mxu0 %v1715
    %1795 = vmatprep.subr.mxu0 %v1720
    %1796 = vmatpush1.msra.mxu0 %v1719
    %1797 = vmatprep.subr.mxu0 %v1724
    %1798 = vmatpush1.msra.mxu0 %v1723
    %1799 = vmatprep.subr.mxu0 %v1728
    %1800 = vmatpush1.msra.mxu0 %v1727
    %1801 = vmatprep.subr.mxu0 %v1732
    %1802 = vmatpush1.msra.mxu0 %v1731
    %1803 = vmatprep.subr.mxu0 %v1736
    %1804 = vmatpush1.msra.mxu0 %v1735
    %1805 = vmatprep.subr.mxu0 %v1740
    %1806 = vmatpush1.msra.mxu0 %v1739
    %1807 = vmatprep.subr.mxu0 %v1744
    %1808 = vmatpush1.msra.mxu0 %v1743
    %1809 = vmatprep.subr.mxu0 %v1748
    %1810 = vmatpush1.msra.mxu0 %v1747
    %1811 = vmatprep.subr.mxu0 %v1752
    %1812 = vmatpush1.msra.mxu0 %v1751
    %1813 = vmatprep.subr.mxu0 %v1756
    %1814 = vmatpush1.msra.mxu0 %v1755
    %1815 = vmatprep.subr.mxu0 %v1760
    %1816 = vmatpush1.msra.mxu0 %v1759
    %1817 = vmatprep.subr.mxu0 0.0
    %1818 = vmatpush1.msra.mxu0 0.0
    %1819 = vmatprep.subr.mxu0 0.0
    %1820 = vmatpush1.msra.mxu0 0.0
    %1821 = vmatprep.subr.mxu0 0.0
    %1822 = vmatpush1.msra.mxu0 0.0
    %1823 = vmatprep.subr.mxu0 0.0
    %1824 = vmatpush1.msra.mxu0 0.0
    %1825 = vmatprep.subr.mxu0 0.0
    %1826 = vmatpush1.msra.mxu0 0.0
    %1827 = vmatprep.subr.mxu0 0.0
    %1828 = vmatpush1.msra.mxu0 0.0
    %1829 = vmatprep.subr.mxu0 0.0
    %1830 = vmatpush1.msra.mxu0 0.0
    %1831 = vmatprep.subr.mxu0 0.0
    %1832 = vmatpush1.msra.mxu0 0.0
    %1833 = vmatprep.subr.mxu0 0.0
    %1834 = vmatpush1.msra.mxu0 0.0
    %1835 = vmatprep.subr.mxu0 0.0
    %1836 = vmatpush1.msra.mxu0 0.0
    %1837 = vmatprep.subr.mxu0 0.0
    %1838 = vmatpush1.msra.mxu0 0.0
    %1839 = vmatprep.subr.mxu0 0.0
    %1840 = vmatpush1.msra.mxu0 0.0
    %1841 = vmatprep.subr.mxu0 0.0
    %1842 = vmatpush1.msra.mxu0 0.0
    %1843 = vmatprep.subr.mxu0 0.0
    %1844 = vmatpush1.msra.mxu0 0.0
    %1845 = vmatprep.subr.mxu0 0.0
    %1846 = vmatpush1.msra.mxu0 0.0
    %1847 = vmatprep.subr.mxu0 0.0
    %1848 = vmatpush1.msra.mxu0 0.0
    %1849 = vmatprep.mubr.f32.mxu0 0.0
    %1850 = vmatmul.mubr.f32.gmra.mrb[0].mxu0 %v1694
    %v1851 = vpop.f32.mrb[0].mxu0
    %v1852 = vadd.f32 %v1768, %v1851
    %v1853 = vpop.f32.mrb[0].mxu0
    %v1854 = vadd.f32 %v1772, %v1853
    %1855 = vdwg.mxu0
    %1856 = vmatprep.subr.mxu0 %v1702
    %1857 = vmatpush1.msra.mxu0 %v1701
    %1858 = vmatprep.subr.mxu0 %v1706
    %1859 = vmatpush1.msra.mxu0 %v1705
    %1860 = vmatprep.subr.mxu0 %v1710
    %1861 = vmatpush1.msra.mxu0 %v1709
    %1862 = vmatprep.subr.mxu0 %v1714
    %1863 = vmatpush1.msra.mxu0 %v1713
    %1864 = vmatprep.subr.mxu0 %v1718
    %1865 = vmatpush1.msra.mxu0 %v1717
    %1866 = vmatprep.subr.mxu0 %v1722
    %1867 = vmatpush1.msra.mxu0 %v1721
    %1868 = vmatprep.subr.mxu0 %v1726
    %1869 = vmatpush1.msra.mxu0 %v1725
    %1870 = vmatprep.subr.mxu0 %v1730
    %1871 = vmatpush1.msra.mxu0 %v1729
    %1872 = vmatprep.subr.mxu0 %v1734
    %1873 = vmatpush1.msra.mxu0 %v1733
    %1874 = vmatprep.subr.mxu0 %v1738
    %1875 = vmatpush1.msra.mxu0 %v1737
    %1876 = vmatprep.subr.mxu0 %v1742
    %1877 = vmatpush1.msra.mxu0 %v1741
    %1878 = vmatprep.subr.mxu0 %v1746
    %1879 = vmatpush1.msra.mxu0 %v1745
    %1880 = vmatprep.subr.mxu0 %v1750
    %1881 = vmatpush1.msra.mxu0 %v1749
    %1882 = vmatprep.subr.mxu0 %v1754
    %1883 = vmatpush1.msra.mxu0 %v1753
    %1884 = vmatprep.subr.mxu0 %v1758
    %1885 = vmatpush1.msra.mxu0 %v1757
    %1886 = vmatprep.subr.mxu0 %v1762
    %1887 = vmatpush1.msra.mxu0 %v1761
    %1888 = vmatprep.subr.mxu0 0.0
    %1889 = vmatpush1.msra.mxu0 0.0
    %1890 = vmatprep.subr.mxu0 0.0
    %1891 = vmatpush1.msra.mxu0 0.0
    %1892 = vmatprep.subr.mxu0 0.0
    %1893 = vmatpush1.msra.mxu0 0.0
    %1894 = vmatprep.subr.mxu0 0.0
    %1895 = vmatpush1.msra.mxu0 0.0
    %1896 = vmatprep.subr.mxu0 0.0
    %1897 = vmatpush1.msra.mxu0 0.0
    %1898 = vmatprep.subr.mxu0 0.0
    %1899 = vmatpush1.msra.mxu0 0.0
    %1900 = vmatprep.subr.mxu0 0.0
    %1901 = vmatpush1.msra.mxu0 0.0
    %1902 = vmatprep.subr.mxu0 0.0
    %1903 = vmatpush1.msra.mxu0 0.0
    %1904 = vmatprep.subr.mxu0 0.0
    %1905 = vmatpush1.msra.mxu0 0.0
    %1906 = vmatprep.subr.mxu0 0.0
    %1907 = vmatpush1.msra.mxu0 0.0
    %1908 = vmatprep.subr.mxu0 0.0
    %1909 = vmatpush1.msra.mxu0 0.0
    %1910 = vmatprep.subr.mxu0 0.0
    %1911 = vmatpush1.msra.mxu0 0.0
    %1912 = vmatprep.subr.mxu0 0.0
    %1913 = vmatpush1.msra.mxu0 0.0
    %1914 = vmatprep.subr.mxu0 0.0
    %1915 = vmatpush1.msra.mxu0 0.0
    %1916 = vmatprep.subr.mxu0 0.0
    %1917 = vmatpush1.msra.mxu0 0.0
    %1918 = vmatprep.subr.mxu0 0.0
    %1919 = vmatpush1.msra.mxu0 0.0
    %1920 = vmatprep.mubr.f32.mxu0 0.0
    %1921 = vmatmul.mubr.f32.gmra.mrb[0].mxu0 %v1694
    %v1922 = vpop.f32.mrb[0].mxu0
    %v1923 = vadd.f32 %v1776, %v1922
    %v1924 = vpop.f32.mrb[0].mxu0
    %v1925 = vadd.f32 %v1780, %v1924
    %1926 = vdwg.mxu0
    %v1927 = vxor.u32 %v1852, 2147483648
    %v1928 = vmul.f32 %v1927, 1.442695
    %v1929 = vpow.pop %v1928
    %v1930 = vadd.f32 %v1929, 1.0
    %v1931 = vrcp.pop %v1930
    %v1932 = vmul.f32 1.0, %v1931
    %v1933 = vxor.u32 %v1854, 2147483648
    %v1934 = vmul.f32 %v1933, 1.442695
    %v1935 = vpow.pop %v1934
    %v1936 = vadd.f32 %v1935, 1.0
    %v1937 = vrcp.pop %v1936
    %v1938 = vmul.f32 1.0, %v1937
    %v1939 = vtanh.pop %v1923
    %v1940 = vxor.u32 %v1925, 2147483648
    %v1941 = vmul.f32 %v1940, 1.442695
    %v1942 = vpow.pop %v1941
    %v1943 = vadd.f32 %v1942, 1.0
    %v1944 = vrcp.pop %v1943
    %v1945 = vmul.f32 1.0, %v1944
    %v1946 = vmul.f32 %v1938, 0.0
    %v1947 = vmul.f32 %v1932, %v1939
    %v1948 = vadd.f32 %v1946, %v1947
    %v1949 = vtanh.pop %v1948
    %v1950 = vmul.f32 %v1945, %v1949
    %v1951 = vmax.f32 %v1950, 0.0
    %s1952 = sshll.u32 %s1696, 4
    %1953 = dma.done %s55, %s1952
    %v1954 = vld [vmem:[#allocation4] sm:$0xff]
    %v1955 = vld [vmem:[#allocation4 + $0x8] sm:$0xff]
    %v1956 = vld [vmem:[#allocation4 + $0x10] sm:$0xff]
    %v1957 = vld [vmem:[#allocation4 + $0x18] sm:$0xff]
    %v1958 = vld [vmem:[#allocation4 + $0x20] sm:$0xff]
    %v1959 = vld [vmem:[#allocation4 + $0x28] sm:$0xff]
    %v1960 = vld [vmem:[#allocation4 + $0x30] sm:$0xff]
    %v1961 = vld [vmem:[#allocation4 + $0x38] sm:$0xff]
    %v1962 = vld [vmem:[#allocation4 + $0x40] sm:$0xff]
    %v1963 = vld [vmem:[#allocation4 + $0x48] sm:$0xff]
    %v1964 = vld [vmem:[#allocation4 + $0x50] sm:$0xff]
    %v1965 = vld [vmem:[#allocation4 + $0x58] sm:$0xff]
    %v1966 = vld [vmem:[#allocation4 + $0x60] sm:$0xff]
    %v1967 = vld [vmem:[#allocation4 + $0x68] sm:$0xff]
    %v1968 = vld [vmem:[#allocation4 + $0x70] sm:$0xff]
    %v1969 = vld [vmem:[#allocation4 + $0x78] sm:$0xff]
    %v1970 = vld [vmem:[#allocation4 + $0x80] sm:$0xff]
    %v1971 = vld [vmem:[#allocation4 + $0x88] sm:$0xff]
    %v1972 = vld [vmem:[#allocation4 + $0x90] sm:$0xff]
    %v1973 = vld [vmem:[#allocation4 + $0x98] sm:$0xff]
    %v1974 = vld [vmem:[#allocation4 + $0xa0] sm:$0xff]
    %v1975 = vld [vmem:[#allocation4 + $0xa8] sm:$0xff]
    %v1976 = vld [vmem:[#allocation4 + $0xb0] sm:$0xff]
    %v1977 = vld [vmem:[#allocation4 + $0xb8] sm:$0xff]
    %v1978 = vld [vmem:[#allocation4 + $0xc0] sm:$0xff]
    %v1979 = vld [vmem:[#allocation4 + $0xc8] sm:$0xff]
    %v1980 = vld [vmem:[#allocation4 + $0xd0] sm:$0xff]
    %v1981 = vld [vmem:[#allocation4 + $0xd8] sm:$0xff]
    %v1982 = vld [vmem:[#allocation4 + $0xe0] sm:$0xff]
    %v1983 = vld [vmem:[#allocation4 + $0xe8] sm:$0xff]
    %v1984 = vld [vmem:[#allocation4 + $0xf0] sm:$0xff]
    %v1985 = vld [vmem:[#allocation4 + $0xf8] sm:$0xff]
    %v1986 = vld [vmem:[#allocation4 + $0x100] sm:$0xff]
    %v1987 = vld [vmem:[#allocation4 + $0x108] sm:$0xff]
    %v1988 = vld [vmem:[#allocation4 + $0x110] sm:$0xff]
    %v1989 = vld [vmem:[#allocation4 + $0x118] sm:$0xff]
    %v1990 = vld [vmem:[#allocation4 + $0x120] sm:$0xff]
    %v1991 = vld [vmem:[#allocation4 + $0x128] sm:$0xff]
    %v1992 = vld [vmem:[#allocation4 + $0x130] sm:$0xff]
    %v1993 = vld [vmem:[#allocation4 + $0x138] sm:$0xff]
    %v1994 = vld [vmem:[#allocation4 + $0x140] sm:$0xff]
    %v1995 = vld [vmem:[#allocation4 + $0x148] sm:$0xff]
    %v1996 = vld [vmem:[#allocation4 + $0x150] sm:$0xff]
    %v1997 = vld [vmem:[#allocation4 + $0x158] sm:$0xff]
    %v1998 = vld [vmem:[#allocation4 + $0x160] sm:$0xff]
    %v1999 = vld [vmem:[#allocation4 + $0x168] sm:$0xff]
    %v2000 = vld [vmem:[#allocation4 + $0x170] sm:$0xff]
    %v2001 = vld [vmem:[#allocation4 + $0x178] sm:$0xff]
    %v2002 = vld [vmem:[#allocation4 + $0x180] sm:$0xff]
    %v2003 = vld [vmem:[#allocation4 + $0x188] sm:$0xff]
    %v2004 = vld [vmem:[#allocation4 + $0x190] sm:$0xff]
    %v2005 = vld [vmem:[#allocation4 + $0x198] sm:$0xff]
    %v2006 = vld [vmem:[#allocation4 + $0x1a0] sm:$0xff]
    %v2007 = vld [vmem:[#allocation4 + $0x1a8] sm:$0xff]
    %v2008 = vld [vmem:[#allocation4 + $0x1b0] sm:$0xff]
    %v2009 = vld [vmem:[#allocation4 + $0x1b8] sm:$0xff]
    %v2010 = vld [vmem:[#allocation4 + $0x1c0] sm:$0xff]
    %v2011 = vld [vmem:[#allocation4 + $0x1c8] sm:$0xff]
    %v2012 = vld [vmem:[#allocation4 + $0x1d0] sm:$0xff]
    %v2013 = vld [vmem:[#allocation4 + $0x1d8] sm:$0xff]
    %v2014 = vld [vmem:[#allocation4 + $0x1e0] sm:$0xff]
    %v2015 = vld [vmem:[#allocation4 + $0x1e8] sm:$0xff]
    %v2016 = vld [vmem:[#allocation4 + $0x1f0] sm:$0xff]
    %v2017 = vld [vmem:[#allocation4 + $0x1f8] sm:$0xff]
    %2018 = vmatprep.subr.mxu0 %v1955
    %2019 = vmatpush1.msra.mxu0 %v1954
    %2020 = vmatprep.subr.mxu0 %v1959
    %2021 = vmatpush1.msra.mxu0 %v1958
    %2022 = vmatprep.subr.mxu0 %v1963
    %2023 = vmatpush1.msra.mxu0 %v1962
    %2024 = vmatprep.subr.mxu0 %v1967
    %2025 = vmatpush1.msra.mxu0 %v1966
    %2026 = vmatprep.subr.mxu0 %v1971
    %2027 = vmatpush1.msra.mxu0 %v1970
    %2028 = vmatprep.subr.mxu0 %v1975
    %2029 = vmatpush1.msra.mxu0 %v1974
    %2030 = vmatprep.subr.mxu0 %v1979
    %2031 = vmatpush1.msra.mxu0 %v1978
    %2032 = vmatprep.subr.mxu0 %v1983
    %2033 = vmatpush1.msra.mxu0 %v1982
    %2034 = vmatprep.subr.mxu0 %v1987
    %2035 = vmatpush1.msra.mxu0 %v1986
    %2036 = vmatprep.subr.mxu0 %v1991
    %2037 = vmatpush1.msra.mxu0 %v1990
    %2038 = vmatprep.subr.mxu0 %v1995
    %2039 = vmatpush1.msra.mxu0 %v1994
    %2040 = vmatprep.subr.mxu0 %v1999
    %2041 = vmatpush1.msra.mxu0 %v1998
    %2042 = vmatprep.subr.mxu0 %v2003
    %2043 = vmatpush1.msra.mxu0 %v2002
    %2044 = vmatprep.subr.mxu0 %v2007
    %2045 = vmatpush1.msra.mxu0 %v2006
    %2046 = vmatprep.subr.mxu0 %v2011
    %2047 = vmatpush1.msra.mxu0 %v2010
    %2048 = vmatprep.subr.mxu0 %v2015
    %2049 = vmatpush1.msra.mxu0 %v2014
    %2050 = vmatprep.subr.mxu0 0.0
    %2051 = vmatpush1.msra.mxu0 0.0
    %2052 = vmatprep.subr.mxu0 0.0
    %2053 = vmatpush1.msra.mxu0 0.0
    %2054 = vmatprep.subr.mxu0 0.0
    %2055 = vmatpush1.msra.mxu0 0.0
    %2056 = vmatprep.subr.mxu0 0.0
    %2057 = vmatpush1.msra.mxu0 0.0
    %2058 = vmatprep.subr.mxu0 0.0
    %2059 = vmatpush1.msra.mxu0 0.0
    %2060 = vmatprep.subr.mxu0 0.0
    %2061 = vmatpush1.msra.mxu0 0.0
    %2062 = vmatprep.subr.mxu0 0.0
    %2063 = vmatpush1.msra.mxu0 0.0
    %2064 = vmatprep.subr.mxu0 0.0
    %2065 = vmatpush1.msra.mxu0 0.0
    %2066 = vmatprep.subr.mxu0 0.0
    %2067 = vmatpush1.msra.mxu0 0.0
    %2068 = vmatprep.subr.mxu0 0.0
    %2069 = vmatpush1.msra.mxu0 0.0
    %2070 = vmatprep.subr.mxu0 0.0
    %2071 = vmatpush1.msra.mxu0 0.0
    %2072 = vmatprep.subr.mxu0 0.0
    %2073 = vmatpush1.msra.mxu0 0.0
    %2074 = vmatprep.subr.mxu0 0.0
    %2075 = vmatpush1.msra.mxu0 0.0
    %2076 = vmatprep.subr.mxu0 0.0
    %2077 = vmatpush1.msra.mxu0 0.0
    %2078 = vmatprep.subr.mxu0 0.0
    %2079 = vmatpush1.msra.mxu0 0.0
    %2080 = vmatprep.subr.mxu0 0.0
    %2081 = vmatpush1.msra.mxu0 0.0
    %2082 = vmatprep.mubr.f32.mxu0 0.0
    %2083 = vmatmul.mubr.f32.gmra.mrb[0].mxu0 %v1950
    %v2084 = vpop.f32.mrb[0].mxu0
    %v2085 = vadd.f32 0.0, %v2084
    %v2086 = vpop.f32.mrb[0].mxu0
    %v2087 = vadd.f32 0.0, %v2086
    %2088 = vdwg.mxu0
    %2089 = vmatprep.subr.mxu0 %v1957
    %2090 = vmatpush1.msra.mxu0 %v1956
    %2091 = vmatprep.subr.mxu0 %v1961
    %2092 = vmatpush1.msra.mxu0 %v1960
    %2093 = vmatprep.subr.mxu0 %v1965
    %2094 = vmatpush1.msra.mxu0 %v1964
    %2095 = vmatprep.subr.mxu0 %v1969
    %2096 = vmatpush1.msra.mxu0 %v1968
    %2097 = vmatprep.subr.mxu0 %v1973
    %2098 = vmatpush1.msra.mxu0 %v1972
    %2099 = vmatprep.subr.mxu0 %v1977
    %2100 = vmatpush1.msra.mxu0 %v1976
    %2101 = vmatprep.subr.mxu0 %v1981
    %2102 = vmatpush1.msra.mxu0 %v1980
    %2103 = vmatprep.subr.mxu0 %v1985
    %2104 = vmatpush1.msra.mxu0 %v1984
    %2105 = vmatprep.subr.mxu0 %v1989
    %2106 = vmatpush1.msra.mxu0 %v1988
    %2107 = vmatprep.subr.mxu0 %v1993
    %2108 = vmatpush1.msra.mxu0 %v1992
    %2109 = vmatprep.subr.mxu0 %v1997
    %2110 = vmatpush1.msra.mxu0 %v1996
    %2111 = vmatprep.subr.mxu0 %v2001
    %2112 = vmatpush1.msra.mxu0 %v2000
    %2113 = vmatprep.subr.mxu0 %v2005
    %2114 = vmatpush1.msra.mxu0 %v2004
    %2115 = vmatprep.subr.mxu0 %v2009
    %2116 = vmatpush1.msra.mxu0 %v2008
    %2117 = vmatprep.subr.mxu0 %v2013
    %2118 = vmatpush1.msra.mxu0 %v2012
    %2119 = vmatprep.subr.mxu0 %v2017
    %2120 = vmatpush1.msra.mxu0 %v2016
    %2121 = vmatprep.subr.mxu0 0.0
    %2122 = vmatpush1.msra.mxu0 0.0
    %2123 = vmatprep.subr.mxu0 0.0
    %2124 = vmatpush1.msra.mxu0 0.0
    %2125 = vmatprep.subr.mxu0 0.0
    %2126 = vmatpush1.msra.mxu0 0.0
    %2127 = vmatprep.subr.mxu0 0.0
    %2128 = vmatpush1.msra.mxu0 0.0
    %2129 = vmatprep.subr.mxu0 0.0
    %2130 = vmatpush1.msra.mxu0 0.0
    %2131 = vmatprep.subr.mxu0 0.0
    %2132 = vmatpush1.msra.mxu0 0.0
    %2133 = vmatprep.subr.mxu0 0.0
    %2134 = vmatpush1.msra.mxu0 0.0
    %2135 = vmatprep.subr.mxu0 0.0
    %2136 = vmatpush1.msra.mxu0 0.0
    %2137 = vmatprep.subr.mxu0 0.0
    %2138 = vmatpush1.msra.mxu0 0.0
    %2139 = vmatprep.subr.mxu0 0.0
    %2140 = vmatpush1.msra.mxu0 0.0
    %2141 = vmatprep.subr.mxu0 0.0
    %2142 = vmatpush1.msra.mxu0 0.0
    %2143 = vmatprep.subr.mxu0 0.0
    %2144 = vmatpush1.msra.mxu0 0.0
    %2145 = vmatprep.subr.mxu0 0.0
    %2146 = vmatpush1.msra.mxu0 0.0
    %2147 = vmatprep.subr.mxu0 0.0
    %2148 = vmatpush1.msra.mxu0 0.0
    %2149 = vmatprep.subr.mxu0 0.0
    %2150 = vmatpush1.msra.mxu0 0.0
    %2151 = vmatprep.subr.mxu0 0.0
    %2152 = vmatpush1.msra.mxu0 0.0
    %2153 = vmatprep.mubr.f32.mxu0 0.0
    %2154 = vmatmul.mubr.f32.gmra.mrb[0].mxu0 %v1950
    %v2155 = vpop.f32.mrb[0].mxu0
    %v2156 = vadd.f32 0.0, %v2155
    %v2157 = vpop.f32.mrb[0].mxu0
    %v2158 = vadd.f32 0.0, %v2157
    %2159 = vdwg.mxu0
    %v2160 = vadd.f32 %v1852, %v2085
    %v2161 = vadd.f32 %v1854, %v2087
    %v2162 = vadd.f32 %v1923, %v2156
    %v2163 = vadd.f32 %v1925, %v2158
    %v2164 = vxor.u32 %v2160, 2147483648
    %v2165 = vmul.f32 %v2164, 1.442695
    %v2166 = vpow.pop %v2165
    %v2167 = vadd.f32 %v2166, 1.0
    %v2168 = vrcp.pop %v2167
    %v2169 = vmul.f32 1.0, %v2168
    %v2170 = vxor.u32 %v2161, 2147483648
    %v2171 = vmul.f32 %v2170, 1.442695
    %v2172 = vpow.pop %v2171
    %v2173 = vadd.f32 %v2172, 1.0
    %v2174 = vrcp.pop %v2173
    %v2175 = vmul.f32 1.0, %v2174
    %v2176 = vtanh.pop %v2162
    %v2177 = vxor.u32 %v2163, 2147483648
    %v2178 = vmul.f32 %v2177, 1.442695
    %v2179 = vpow.pop %v2178
    %v2180 = vadd.f32 %v2179, 1.0
    %v2181 = vrcp.pop %v2180
    %v2182 = vmul.f32 1.0, %v2181
    %v2183 = vmul.f32 %v2175, %v1948
    %v2184 = vmul.f32 %v2169, %v2176
    %v2185 = vadd.f32 %v2183, %v2184
    %v2186 = vtanh.pop %v2185
    %v2187 = vmul.f32 %v2182, %v2186
    %v2188 = vmax.f32 %v2187, 0.0
    %v2189 = vld [vmem:[%s7] sm:$0x1]
    %v2191 = vlaneseq
    %v2192 = vshrl.u32 %v2191, 7
    %v2193 = vsub.s32 0, %v2192
    %v2194 = vrot.slane %v2189, %v2193
    %v2196 = vmul.f32 %v1951, %v2194
    %v2197 = vmul.f32 %v2188, %v2194
    %2198 = vadd.xlane.f32.xlu0 %v2196
    %v2199 = vpop.xlane.xlu0 %2198
    %2200 = vadd.xlane.f32.xlu0 %v2197
    %v2201 = vpop.xlane.xlu0 %2200
    %v2202 = vld [vmem:[#allocation6] sm:$0x1]
    %v2204 = vlaneseq
    %v2205 = vshrl.u32 %v2204, 7
    %v2206 = vsub.s32 0, %v2205
    %v2207 = vrot.slane %v2202, %v2206
    %v2209 = vadd.f32 %v2199, %v2207
    %v2210 = vadd.f32 %v2201, %v2207
    %vm2211 = vcmask 7168
    %2212 = vst.msk [vmem:[%s9] sm:$0xff] %vm2211, %v2209
    %2213 = vst.msk [vmem:[%s9 + $0x8] sm:$0xff] %vm2211, %v2210
    // Predicated region
    $region42: #{tpu_custom_call.1} parent=1 // pred_check
      _
    $region43: #{tpu_custom_call.1} parent=1 // pred_check_branch
      %2215 = sbr.rel (0) target = $region45
    $region44: #{tpu_custom_call.1} parent=1 // pred_region
      _
    $region45: #{tpu_custom_call.1} parent=1 // pred_fallthru
      _
    // Predicated region
    $region46: #{tpu_custom_call.1} parent=1 // pred_check
      _
    $region47: #{tpu_custom_call.1} parent=1 // pred_check_branch
      %2217 = sbr.rel (0) target = $region49
    $region48: #{tpu_custom_call.1} parent=1 // pred_region
      _
    $region49: #{tpu_custom_call.1} parent=1 // pred_fallthru
      _
    %2218 = vsyncpa [#allocation8], 1
  %2219 = vsyncmov [#allocation5]
  %s2220 = vpop.sfrf %2219
  %p2221 = scmp.eq.s32.totalorder %s2220, 0
  %p2222 = pneg %p2221
  %2224 = shalt.err (%p2222)
  %s2225 = scalar_lea.sflag [#allocation5], 1
  %2226 = vsyncmov %s2225
  %s2227 = vpop.sfrf %2226
  %p2228 = scmp.eq.s32.totalorder %s2227, 0
  %p2229 = pneg %p2228
  %2231 = shalt.err (%p2229)

</llo_original>
